<compile_context>
chip_gen: v5e
topology: v5e:2x2
jax: 0.10.0
libtpu: 0.0.40
codegen_flags: <defaults>
</compile_context>

<pallas_src>
import functools
import warnings

import numpy as np
import jax
import jax.numpy as jnp
from jax.experimental import pallas as pl
from jax.experimental.pallas import tpu as pltpu


# ---------------------------------------------------------------------------
# Host-side: interpolation matrices with PyTorch index semantics.
# ---------------------------------------------------------------------------
def _nearest_weight_matrix(in_size, out_size):
    # PyTorch legacy 'nearest' (nn.Upsample default): src = floor(dst * in/out)
    dst = np.arange(out_size)
    src = np.floor(dst * (float(in_size) / float(out_size))).astype(np.int64)
    src = np.clip(src, 0, in_size - 1)
    w = np.zeros((out_size, in_size), dtype=np.float32)
    w[dst, src] = 1.0
    return w


def _bilinear_weight_matrix(in_size, out_size, align_corners):
    dst = np.arange(out_size, dtype=np.float64)
    if align_corners and out_size > 1:
        src = dst * (in_size - 1) / max(out_size - 1, 1)
    else:
        src = (dst + 0.5) * (float(in_size) / float(out_size)) - 0.5
        src = np.maximum(src, 0.0)
    lo = np.clip(np.floor(src).astype(np.int64), 0, in_size - 1)
    hi = np.minimum(lo + 1, in_size - 1)
    frac = src - lo
    w = np.zeros((out_size, in_size), dtype=np.float64)
    w[np.arange(out_size), lo] += 1.0 - frac
    w[np.arange(out_size), hi] += frac
    return w


@functools.lru_cache(maxsize=128)
def _resize_weights(h_in, h_out, w_in, w_out, mode, align_corners, dtype_name):
    """Device-resident Sh (H_out,H_in) / SwT (W_in,W_out), cached across calls."""
    if mode == "nearest":
        sh_np = _nearest_weight_matrix(h_in, h_out)
        sw_np = _nearest_weight_matrix(w_in, w_out)
    elif mode == "bilinear":
        sh_np = _bilinear_weight_matrix(h_in, h_out, bool(align_corners))
        sw_np = _bilinear_weight_matrix(w_in, w_out, bool(align_corners))
    else:
        # TODO(synk): other interpolate modes (bicubic, area, nearest-exact) not implemented.
        raise NotImplementedError(f"mode={mode}")
    wdt = jnp.dtype(dtype_name)
    sh = jnp.asarray(sh_np, dtype=wdt)        # (H_out, H_in)
    swt = jnp.asarray(sw_np.T, dtype=wdt)     # (W_in, W_out)
    return sh, swt


@functools.lru_cache(maxsize=1)
def _tpu_config():
    """Returns (scoped VMEM limit to request, whether chip has 2 TensorCores)."""
    vmem_cap = 128 * 1024 * 1024
    try:
        vmem_cap = int(pltpu.get_tpu_info().vmem_capacity_bytes)
    except Exception:
        pass
    two_tc = False
    try:
        kind = jax.devices()[0].device_kind.lower()
        two_tc = any(tag in kind for tag in ("v7", "v4", "v5p", "v5 p"))
    except Exception:
        pass
    if vmem_cap <= 64 * 1024 * 1024:      # v7x: 64 MiB VMEM per TC, 2 TCs/chip
        two_tc = True
    vmem_limit = max(16 * 1024 * 1024, min(vmem_cap // 2, 64 * 1024 * 1024))
    return vmem_limit, two_tc


def _pick_batch(nc, h_in, w_in, h_out, w_out, in_item, cdt_item, fold_w,
                vmem_limit, two_tc):
    """Planes per grid step: VMEM-budget aware (incl. intermediates), divisor of nc."""
    # Constant footprint: weights (worst case double-buffered) + one f32 plane.
    const = 2 * (h_out * h_in + w_in * w_out) * cdt_item + h_out * w_out * 4
    # Per-plane: double-buffered input + output blocks, plus (if folding) the
    # intermediate t (f32 dot result + compute-dtype copy).
    per_plane = 2 * (h_in * w_in + h_out * w_out) * in_item
    if fold_w:
        per_plane += h_in * w_out * (cdt_item + 4)
    budget = vmem_limit - const - (2 << 20)              # 2 MiB compiler slack
    b_max = int(max(1, min(nc, budget // max(per_plane, 1), 64)))
    divisors = [d for d in range(1, b_max + 1) if nc % d == 0] or [1]
    if two_tc and nc >= 2:
        # Keep both TensorCores busy: prefer an even step count, else >= 2 steps.
        even = [d for d in divisors if (nc // d) % 2 == 0]
        multi = [d for d in divisors if (nc // d) >= 2]
        divisors = even or multi or divisors
    # On single-TC chips (v5e/v6e) there is no grid>=2 cap: take the largest
    # block that fits the budget (fewer ~0.35us grid steps, bigger folded M).
    return max(divisors)


# ---------------------------------------------------------------------------
# Pallas kernel: batched separable resize of B planes per grid step.
# ---------------------------------------------------------------------------
def _resize_kernel(sh_ref, swt_ref, x_ref, o_ref, *, nb, w_first, fold_w):
    """x_ref: (nb, H_in, W_in)  ->  o_ref: (nb, H_out, W_out)."""
    sh = sh_ref[...]      # (H_out, H_in)   compute dtype
    swt = swt_ref[...]    # (W_in,  W_out)  compute dtype
    cdt = sh.dtype

    if fold_w:
        # W-resize as ONE folded matmul over all nb planes (M = nb*H_in fills
        # the MXU); then per-plane H-resize stored straight into o_ref[i]
        # (no concatenate, only one f32 plane live at a time).
        x = x_ref[...]
        if x.dtype != cdt:
            x = x.astype(cdt)
        h_in, w_in = x.shape[1], x.shape[2]
        w_out = swt.shape[1]
        t = jnp.dot(x.reshape(nb * h_in, w_in), swt,
                    preferred_element_type=jnp.float32)
        t = t.astype(cdt).reshape(nb, h_in, w_out)
        for i in range(nb):
            o_ref[i] = jnp.dot(
                sh, t[i], preferred_element_type=jnp.float32).astype(o_ref.dtype)
    else:
        # Per-plane separable resize, MAC-optimal order, direct slice stores.
        for i in range(nb):
            xi = x_ref[i]                                  # (H_in, W_in)
            if xi.dtype != cdt:
                xi = xi.astype(cdt)
            if w_first:
                ti = jnp.dot(xi, swt, preferred_element_type=jnp.float32).astype(cdt)
                o_ref[i] = jnp.dot(
                    sh, ti, preferred_element_type=jnp.float32).astype(o_ref.dtype)
            else:
                ti = jnp.dot(sh, xi, preferred_element_type=jnp.float32).astype(cdt)
                o_ref[i] = jnp.dot(
                    ti, swt, preferred_element_type=jnp.float32).astype(o_ref.dtype)


def pallas_resize(x, size=None, scale_factor=None, mode="nearest", align_corners=None):
    """Equivalent of F.interpolate for 4-D NCHW inputs (nearest / bilinear)."""
    N, C, H_in, W_in = x.shape
    if size is None:
        if isinstance(scale_factor, (tuple, list)):
            sf_h, sf_w = scale_factor
        else:
            sf_h = sf_w = scale_factor
        H_out, W_out = int(H_in * sf_h), int(W_in * sf_w)
    else:
        H_out, W_out = int(size[0]), int(size[1])

    if (H_out, W_out) == (H_in, W_in):
        return x

    # MXU operands in the input's compute dtype (bf16 stays bf16, no f32 upcast
    # of x); accumulation is always f32.  NOTE: for bf16 inputs the
    # inter-matmul intermediate is rounded to bf16, slightly looser than
    # PyTorch's f32 interpolation.
    wdt = jnp.bfloat16 if x.dtype == jnp.bfloat16 else jnp.float32
    sh, swt = _resize_weights(H_in, H_out, W_in, W_out, mode,
                              bool(align_corners), jnp.dtype(wdt).name)

    # TODO(synk): integer-factor 'nearest' could bypass the MXU with a pure
    # repeat/broadcast copy kernel; kept on the (exact) 0/1-weight matmul path.

    # MAC-optimal order for the separable map; fold the W-resize across all B
    # planes when H_in is sublane aligned (per-plane slices of t then stay
    # tile aligned -> no hidden intra-VMEM slice copies).
    macs_w_first = H_in * W_out * (W_in + H_out)
    macs_h_first = H_out * W_in * (H_in + W_out)
    w_first = macs_w_first <= macs_h_first
    sublane = 8 if wdt == jnp.float32 else 16
    fold_w = w_first and (H_in % sublane == 0)

    NC = N * C
    in_item = jnp.dtype(x.dtype).itemsize
    cdt_item = jnp.dtype(wdt).itemsize
    vmem_limit, two_tc = _tpu_config()
    B = _pick_batch(NC, H_in, W_in, H_out, W_out, in_item, cdt_item, fold_w,
                    vmem_limit, two_tc)
    grid = NC // B

    x3 = x.reshape(NC, H_in, W_in)                 # free view reshape in XLA

    kernel = functools.partial(_resize_kernel, nb=B, w_first=w_first, fold_w=fold_w)

    flops = 2 * NC * min(macs_w_first, macs_h_first)
    bytes_accessed = (NC * (H_in * W_in + H_out * W_out) * in_item
                      + (H_out * H_in + W_in * W_out) * cdt_item)
    cost = pl.CostEstimate(flops=flops, transcendentals=0,
                           bytes_accessed=bytes_accessed)

    def _run(single_buffer_weights):
        wkw = dict(pipeline_mode=pl.Buffered(1)) if single_buffer_weights else {}
        return pl.pallas_call(
            kernel,
            out_shape=jax.ShapeDtypeStruct((NC, H_out, W_out), x.dtype),
            grid_spec=pltpu.PrefetchScalarGridSpec(
                num_scalar_prefetch=0,
                grid=(grid,),
                in_specs=[
                    # Weights never change across grid steps -> single buffer.
                    pl.BlockSpec((H_out, H_in), lambda i: (0, 0), **wkw),
                    pl.BlockSpec((W_in, W_out), lambda i: (0, 0), **wkw),
                    pl.BlockSpec((B, H_in, W_in), lambda i: (i, 0, 0)),
                ],
                # Direct NCHW output (no post-kernel HBM transpose); trailing
                # block dims equal the full array dims so any B is layout-legal.
                out_specs=pl.BlockSpec((B, H_out, W_out), lambda i: (i, 0, 0)),
            ),
            compiler_params=pltpu.CompilerParams(
                dimension_semantics=("parallel",),
                vmem_limit_bytes=vmem_limit,
            ),
            cost_estimate=cost,
        )(sh, swt, x3)

    try:
        out = _run(True)
    except Exception:
        # pipeline_mode=pl.Buffered(1) is a pure VMEM saving; fall back to the
        # default double buffering if the installed jax rejects it.
        out = _run(False)

    return out.reshape(N, C, H_out, W_out)


def resize(input, size=None, scale_factor=None, mode="nearest", align_corners=None, warning=True):
    if warning:
        if size is not None and align_corners:
            input_h, input_w = tuple(int(v) for v in input.shape[2:])
            output_h, output_w = tuple(int(v) for v in size)
            # (original code compared output_w > output_h; fixed to input_w)
            if output_h > input_h or output_w > input_w:
                if ((output_h > 1 and output_w > 1 and input_h > 1 and input_w > 1)
                        and (output_h - 1) % (input_h - 1) and (output_w - 1) % (input_w - 1)):
                    warnings.warn(
                        f"When align_corners={align_corners}, the output would more aligned if "
                        f"input size {(input_h, input_w)} is `x+1` and out size "
                        f"{(output_h, output_w)} is `nx+1`")
    if size is not None:
        size = tuple(int(v) for v in size)
    return pallas_resize(input, size=size, scale_factor=scale_factor, mode=mode,
                         align_corners=align_corners)


class Upsample:
    """JAX/Pallas mirror of the PyTorch Upsample module."""

    def __init__(self, size=None, scale_factor=None, mode="nearest", align_corners=None):
        self.size = size
        if isinstance(scale_factor, tuple):
            self.scale_factor = tuple(float(f) for f in scale_factor)
        else:
            self.scale_factor = float(scale_factor) if scale_factor else None
        self.mode = mode
        self.align_corners = align_corners

    def __call__(self, x):
        if not self.size:
            if isinstance(self.scale_factor, tuple):
                size = [int(t * f) for t, f in zip(x.shape[-2:], self.scale_factor)]
            else:
                size = [int(t * self.scale_factor) for t in x.shape[-2:]]
        else:
            size = self.size
        return resize(x, size, None, self.mode, self.align_corners)


if __name__ == "__main__":
    key = jax.random.PRNGKey(0)
    x = jax.random.normal(key, (2, 4, 16, 16), dtype=jnp.float32)

    # 1) Default config: nearest, scale 2 -> (2,4,32,32). W-first folded-matmul
    #    path, even grid on dual-TC chips. Exact vs repeat reference.
    up = Upsample(scale_factor=2.0, mode="nearest")
    y = jax.block_until_ready(up(x))
    y_ref = jnp.repeat(jnp.repeat(x, 2, axis=2), 2, axis=3)
    assert y.shape == (2, 4, 32, 32), y.shape
    np.testing.assert_allclose(np.asarray(y), np.asarray(y_ref), rtol=1e-6, atol=1e-6)

    # 2) Nearest with tuple scale factor -> (32, 48). H-first per-plane path.
    up2 = Upsample(scale_factor=(2.0, 3.0), mode="nearest")
    y2 = jax.block_until_ready(up2(x))
    y2_ref = jnp.repeat(jnp.repeat(x, 2, axis=2), 3, axis=3)
    assert y2.shape == (2, 4, 32, 48), y2.shape
    np.testing.assert_allclose(np.asarray(y2), np.asarray(y2_ref), rtol=1e-6, atol=1e-6)

    # 3) Bilinear, align_corners=False, asymmetric size (H-first order).
    up3 = Upsample(size=(24, 40), mode="bilinear", align_corners=False)
    y3 = jax.block_until_ready(up3(x))
    sh64 = _bilinear_weight_matrix(16, 24, False)
    sw64 = _bilinear_weight_matrix(16, 40, False)
    y3_ref = np.einsum("oh,nchw,vw->ncov", sh64, np.asarray(x, dtype=np.float64), sw64)
    assert y3.shape == (2, 4, 24, 40), y3.shape
    np.testing.assert_allclose(np.asarray(y3), y3_ref, rtol=1e-4, atol=1e-5)

    # 4) Bilinear, align_corners=True (W-first folded path, f32).
    up4 = Upsample(size=(40, 24), mode="bilinear", align_corners=True)
    y4 = jax.block_until_ready(up4(x))
    sh64b = _bilinear_weight_matrix(16, 40, True)
    sw64b = _bilinear_weight_matrix(16, 24, True)
    y4_ref = np.einsum("oh,nchw,vw->ncov", sh64b, np.asarray(x, dtype=np.float64), sw64b)
    assert y4.shape == (2, 4, 40, 24), y4.shape
    np.testing.assert_allclose(np.asarray(y4), y4_ref, rtol=1e-4, atol=1e-5)

    # 5) bf16 nearest (bf16 operands, f32 accumulation, exact for 0/1 weights).
    xb = x.astype(jnp.bfloat16)
    yb = jax.block_until_ready(Upsample(scale_factor=2.0, mode="nearest")(xb))
    yb_ref = jnp.repeat(jnp.repeat(xb, 2, axis=2), 2, axis=3)
    assert yb.dtype == jnp.bfloat16 and yb.shape == (2, 4, 32, 32)
    np.testing.assert_array_equal(np.asarray(yb, dtype=np.float32),
                                  np.asarray(yb_ref, dtype=np.float32))

    print("KERNEL_OK")
</pallas_src>

<mosaic_0001>
module attributes {stable_mosaic.version = 11 : i64} {
  func.func @_resize_kernel(%arg0: i32, %arg1: memref<32x16xf32, #tpu.memory_space<vmem>>, %arg2: memref<16x32xf32, #tpu.memory_space<vmem>>, %arg3: memref<8x16x16xf32, #tpu.memory_space<vmem>>, %arg4: memref<8x32x32xf32, #tpu.memory_space<vmem>>) attributes {dimension_semantics = [#tpu.dimension_semantics<parallel>], iteration_bounds = array<i64: 1>, scalar_prefetch = 0 : i64, scratch_operands = 0 : i64, tpu.core_type = #tpu.core_type<tc>, window_params = [{pipeline_mode = #tpu.pipeline_mode<synchronous>, transform_indices = @transform_0, window_bounds = array<i64: 32, 16>}, {pipeline_mode = #tpu.pipeline_mode<synchronous>, transform_indices = @transform_1, window_bounds = array<i64: 16, 32>}, {transform_indices = @transform_2, window_bounds = array<i64: 8, 16, 16>}, {transform_indices = @transform_3, window_bounds = array<i64: 8, 32, 32>}]} {
    %c0 = arith.constant 0 : index
    %c0_0 = arith.constant 0 : index
    %0 = vector.load %arg1[%c0, %c0_0] : memref<32x16xf32, #tpu.memory_space<vmem>>, vector<32x16xf32>
    %c0_1 = arith.constant 0 : index
    %c0_2 = arith.constant 0 : index
    %1 = vector.load %arg2[%c0_1, %c0_2] : memref<16x32xf32, #tpu.memory_space<vmem>>, vector<16x32xf32>
    %c0_3 = arith.constant 0 : index
    %c0_4 = arith.constant 0 : index
    %c0_5 = arith.constant 0 : index
    %2 = vector.load %arg3[%c0_3, %c0_4, %c0_5] : memref<8x16x16xf32, #tpu.memory_space<vmem>>, vector<8x16x16xf32>
    %3 = vector.shape_cast %2 : vector<8x16x16xf32> to vector<128x16xf32>
    %cst = arith.constant dense<0.000000e+00> : vector<128x32xf32>
    %4 = tpu.matmul %3, %1, %cst {dimension_numbers = #tpu.dot_dimension_numbers<[1], [0], [0], [1], [0, 0, 1, 1], [], []>} : vector<128x16xf32>, vector<16x32xf32>, vector<128x32xf32> -> vector<128x32xf32>
    %5 = vector.shape_cast %4 : vector<128x32xf32> to vector<8x16x32xf32>
    %6 = vector.extract_strided_slice %5 {offsets = [0, 0, 0], sizes = [1, 16, 32], strides = [1, 1, 1]} : vector<8x16x32xf32> to vector<1x16x32xf32>
    %7 = vector.shape_cast %6 : vector<1x16x32xf32> to vector<16x32xf32>
    %cst_6 = arith.constant dense<0.000000e+00> : vector<32x32xf32>
    %8 = tpu.matmul %0, %7, %cst_6 {dimension_numbers = #tpu.dot_dimension_numbers<[1], [0], [0], [1], [0, 0, 1, 1], [], []>} : vector<32x16xf32>, vector<16x32xf32>, vector<32x32xf32> -> vector<32x32xf32>
    %c0_7 = arith.constant 0 : index
    %c0_8 = arith.constant 0 : index
    %c0_9 = arith.constant 0 : index
    %9 = vector.load %arg4[%c0_7, %c0_8, %c0_9] : memref<8x32x32xf32, #tpu.memory_space<vmem>>, vector<1x32x32xf32>
    %10 = vector.shape_cast %9 : vector<1x32x32xf32> to vector<32x32xf32>
    %11 = vector.shape_cast %8 : vector<32x32xf32> to vector<1x32x32xf32>
    tpu.vector_store %arg4[%c0_7, %c0_8, %c0_9], %11 {strides = array<i32>} : memref<8x32x32xf32, #tpu.memory_space<vmem>>, vector<1x32x32xf32>,
    %12 = vector.extract_strided_slice %5 {offsets = [1, 0, 0], sizes = [1, 16, 32], strides = [1, 1, 1]} : vector<8x16x32xf32> to vector<1x16x32xf32>
    %13 = vector.shape_cast %12 : vector<1x16x32xf32> to vector<16x32xf32>
    %cst_10 = arith.constant dense<0.000000e+00> : vector<32x32xf32>
    %14 = tpu.matmul %0, %13, %cst_10 {dimension_numbers = #tpu.dot_dimension_numbers<[1], [0], [0], [1], [0, 0, 1, 1], [], []>} : vector<32x16xf32>, vector<16x32xf32>, vector<32x32xf32> -> vector<32x32xf32>
    %c1 = arith.constant 1 : index
    %c0_11 = arith.constant 0 : index
    %c0_12 = arith.constant 0 : index
    %15 = vector.load %arg4[%c1, %c0_11, %c0_12] : memref<8x32x32xf32, #tpu.memory_space<vmem>>, vector<1x32x32xf32>
    %16 = vector.shape_cast %15 : vector<1x32x32xf32> to vector<32x32xf32>
    %17 = vector.shape_cast %14 : vector<32x32xf32> to vector<1x32x32xf32>
    tpu.vector_store %arg4[%c1, %c0_11, %c0_12], %17 {strides = array<i32>} : memref<8x32x32xf32, #tpu.memory_space<vmem>>, vector<1x32x32xf32>,
    %18 = vector.extract_strided_slice %5 {offsets = [2, 0, 0], sizes = [1, 16, 32], strides = [1, 1, 1]} : vector<8x16x32xf32> to vector<1x16x32xf32>
    %19 = vector.shape_cast %18 : vector<1x16x32xf32> to vector<16x32xf32>
    %cst_13 = arith.constant dense<0.000000e+00> : vector<32x32xf32>
    %20 = tpu.matmul %0, %19, %cst_13 {dimension_numbers = #tpu.dot_dimension_numbers<[1], [0], [0], [1], [0, 0, 1, 1], [], []>} : vector<32x16xf32>, vector<16x32xf32>, vector<32x32xf32> -> vector<32x32xf32>
    %c2 = arith.constant 2 : index
    %c0_14 = arith.constant 0 : index
    %c0_15 = arith.constant 0 : index
    %21 = vector.load %arg4[%c2, %c0_14, %c0_15] : memref<8x32x32xf32, #tpu.memory_space<vmem>>, vector<1x32x32xf32>
    %22 = vector.shape_cast %21 : vector<1x32x32xf32> to vector<32x32xf32>
    %23 = vector.shape_cast %20 : vector<32x32xf32> to vector<1x32x32xf32>
    tpu.vector_store %arg4[%c2, %c0_14, %c0_15], %23 {strides = array<i32>} : memref<8x32x32xf32, #tpu.memory_space<vmem>>, vector<1x32x32xf32>,
    %24 = vector.extract_strided_slice %5 {offsets = [3, 0, 0], sizes = [1, 16, 32], strides = [1, 1, 1]} : vector<8x16x32xf32> to vector<1x16x32xf32>
    %25 = vector.shape_cast %24 : vector<1x16x32xf32> to vector<16x32xf32>
    %cst_16 = arith.constant dense<0.000000e+00> : vector<32x32xf32>
    %26 = tpu.matmul %0, %25, %cst_16 {dimension_numbers = #tpu.dot_dimension_numbers<[1], [0], [0], [1], [0, 0, 1, 1], [], []>} : vector<32x16xf32>, vector<16x32xf32>, vector<32x32xf32> -> vector<32x32xf32>
    %c3 = arith.constant 3 : index
    %c0_17 = arith.constant 0 : index
    %c0_18 = arith.constant 0 : index
    %27 = vector.load %arg4[%c3, %c0_17, %c0_18] : memref<8x32x32xf32, #tpu.memory_space<vmem>>, vector<1x32x32xf32>
    %28 = vector.shape_cast %27 : vector<1x32x32xf32> to vector<32x32xf32>
    %29 = vector.shape_cast %26 : vector<32x32xf32> to vector<1x32x32xf32>
    tpu.vector_store %arg4[%c3, %c0_17, %c0_18], %29 {strides = array<i32>} : memref<8x32x32xf32, #tpu.memory_space<vmem>>, vector<1x32x32xf32>,
    %30 = vector.extract_strided_slice %5 {offsets = [4, 0, 0], sizes = [1, 16, 32], strides = [1, 1, 1]} : vector<8x16x32xf32> to vector<1x16x32xf32>
    %31 = vector.shape_cast %30 : vector<1x16x32xf32> to vector<16x32xf32>
    %cst_19 = arith.constant dense<0.000000e+00> : vector<32x32xf32>
    %32 = tpu.matmul %0, %31, %cst_19 {dimension_numbers = #tpu.dot_dimension_numbers<[1], [0], [0], [1], [0, 0, 1, 1], [], []>} : vector<32x16xf32>, vector<16x32xf32>, vector<32x32xf32> -> vector<32x32xf32>
    %c4 = arith.constant 4 : index
    %c0_20 = arith.constant 0 : index
    %c0_21 = arith.constant 0 : index
    %33 = vector.load %arg4[%c4, %c0_20, %c0_21] : memref<8x32x32xf32, #tpu.memory_space<vmem>>, vector<1x32x32xf32>
    %34 = vector.shape_cast %33 : vector<1x32x32xf32> to vector<32x32xf32>
    %35 = vector.shape_cast %32 : vector<32x32xf32> to vector<1x32x32xf32>
    tpu.vector_store %arg4[%c4, %c0_20, %c0_21], %35 {strides = array<i32>} : memref<8x32x32xf32, #tpu.memory_space<vmem>>, vector<1x32x32xf32>,
    %36 = vector.extract_strided_slice %5 {offsets = [5, 0, 0], sizes = [1, 16, 32], strides = [1, 1, 1]} : vector<8x16x32xf32> to vector<1x16x32xf32>
    %37 = vector.shape_cast %36 : vector<1x16x32xf32> to vector<16x32xf32>
    %cst_22 = arith.constant dense<0.000000e+00> : vector<32x32xf32>
    %38 = tpu.matmul %0, %37, %cst_22 {dimension_numbers = #tpu.dot_dimension_numbers<[1], [0], [0], [1], [0, 0, 1, 1], [], []>} : vector<32x16xf32>, vector<16x32xf32>, vector<32x32xf32> -> vector<32x32xf32>
    %c5 = arith.constant 5 : index
    %c0_23 = arith.constant 0 : index
    %c0_24 = arith.constant 0 : index
    %39 = vector.load %arg4[%c5, %c0_23, %c0_24] : memref<8x32x32xf32, #tpu.memory_space<vmem>>, vector<1x32x32xf32>
    %40 = vector.shape_cast %39 : vector<1x32x32xf32> to vector<32x32xf32>
    %41 = vector.shape_cast %38 : vector<32x32xf32> to vector<1x32x32xf32>
    tpu.vector_store %arg4[%c5, %c0_23, %c0_24], %41 {strides = array<i32>} : memref<8x32x32xf32, #tpu.memory_space<vmem>>, vector<1x32x32xf32>,
    %42 = vector.extract_strided_slice %5 {offsets = [6, 0, 0], sizes = [1, 16, 32], strides = [1, 1, 1]} : vector<8x16x32xf32> to vector<1x16x32xf32>
    %43 = vector.shape_cast %42 : vector<1x16x32xf32> to vector<16x32xf32>
    %cst_25 = arith.constant dense<0.000000e+00> : vector<32x32xf32>
    %44 = tpu.matmul %0, %43, %cst_25 {dimension_numbers = #tpu.dot_dimension_numbers<[1], [0], [0], [1], [0, 0, 1, 1], [], []>} : vector<32x16xf32>, vector<16x32xf32>, vector<32x32xf32> -> vector<32x32xf32>
    %c6 = arith.constant 6 : index
    %c0_26 = arith.constant 0 : index
    %c0_27 = arith.constant 0 : index
    %45 = vector.load %arg4[%c6, %c0_26, %c0_27] : memref<8x32x32xf32, #tpu.memory_space<vmem>>, vector<1x32x32xf32>
    %46 = vector.shape_cast %45 : vector<1x32x32xf32> to vector<32x32xf32>
    %47 = vector.shape_cast %44 : vector<32x32xf32> to vector<1x32x32xf32>
    tpu.vector_store %arg4[%c6, %c0_26, %c0_27], %47 {strides = array<i32>} : memref<8x32x32xf32, #tpu.memory_space<vmem>>, vector<1x32x32xf32>,
    %48 = vector.extract_strided_slice %5 {offsets = [7, 0, 0], sizes = [1, 16, 32], strides = [1, 1, 1]} : vector<8x16x32xf32> to vector<1x16x32xf32>
    %49 = vector.shape_cast %48 : vector<1x16x32xf32> to vector<16x32xf32>
    %cst_28 = arith.constant dense<0.000000e+00> : vector<32x32xf32>
    %50 = tpu.matmul %0, %49, %cst_28 {dimension_numbers = #tpu.dot_dimension_numbers<[1], [0], [0], [1], [0, 0, 1, 1], [], []>} : vector<32x16xf32>, vector<16x32xf32>, vector<32x32xf32> -> vector<32x32xf32>
    %c7 = arith.constant 7 : index
    %c0_29 = arith.constant 0 : index
    %c0_30 = arith.constant 0 : index
    %51 = vector.load %arg4[%c7, %c0_29, %c0_30] : memref<8x32x32xf32, #tpu.memory_space<vmem>>, vector<1x32x32xf32>
    %52 = vector.shape_cast %51 : vector<1x32x32xf32> to vector<32x32xf32>
    %53 = vector.shape_cast %50 : vector<32x32xf32> to vector<1x32x32xf32>
    tpu.vector_store %arg4[%c7, %c0_29, %c0_30], %53 {strides = array<i32>} : memref<8x32x32xf32, #tpu.memory_space<vmem>>, vector<1x32x32xf32>,
    return
  }
  func.func @transform_0(%arg0: i32) -> (i32, i32) {
    %c0_i32 = arith.constant 0 : i32
    %c0_i32_0 = arith.constant 0 : i32
    %c0_i32_1 = arith.constant 0 : i32
    return %c0_i32, %c0_i32_0 : i32, i32
  }
  func.func @transform_1(%arg0: i32) -> (i32, i32) {
    %c0_i32 = arith.constant 0 : i32
    %c0_i32_0 = arith.constant 0 : i32
    %c0_i32_1 = arith.constant 0 : i32
    return %c0_i32, %c0_i32_0 : i32, i32
  }
  func.func @transform_2(%arg0: i32) -> (i32, i32, i32) {
    %c0_i32 = arith.constant 0 : i32
    %c0_i32_0 = arith.constant 0 : i32
    %c0_i32_1 = arith.constant 0 : i32
    return %arg0, %c0_i32, %c0_i32_0 : i32, i32, i32
  }
  func.func @transform_3(%arg0: i32) -> (i32, i32, i32) {
    %c0_i32 = arith.constant 0 : i32
    %c0_i32_0 = arith.constant 0 : i32
    %c0_i32_1 = arith.constant 0 : i32
    return %arg0, %c0_i32, %c0_i32_0 : i32, i32, i32
  }
}

module attributes {stable_mosaic.version = 11 : i64} {
  func.func @_resize_kernel(%arg0: i32, %arg1: memref<32x16xf32, #tpu.memory_space<vmem>>, %arg2: memref<16x32xf32, #tpu.memory_space<vmem>>, %arg3: memref<8x16x16xf32, #tpu.memory_space<vmem>>, %arg4: memref<8x32x32xf32, #tpu.memory_space<vmem>>) attributes {dimension_semantics = [#tpu.dimension_semantics<parallel>], iteration_bounds = array<i64: 1>, scalar_prefetch = 0 : i64, scratch_operands = 0 : i64, tpu.core_type = #tpu.core_type<tc>, window_params = [{pipeline_mode = #tpu.pipeline_mode<synchronous>, transform_indices = @transform_0, window_bounds = array<i64: 32, 16>}, {pipeline_mode = #tpu.pipeline_mode<synchronous>, transform_indices = @transform_1, window_bounds = array<i64: 16, 32>}, {transform_indices = @transform_2, window_bounds = array<i64: 8, 16, 16>}, {transform_indices = @transform_3, window_bounds = array<i64: 8, 32, 32>}]} {
    %c0 = arith.constant 0 : index
    %c0_0 = arith.constant 0 : index
    %0 = vector.load %arg1[%c0, %c0_0] : memref<32x16xf32, #tpu.memory_space<vmem>>, vector<32x16xf32>
    %c0_1 = arith.constant 0 : index
    %c0_2 = arith.constant 0 : index
    %1 = vector.load %arg2[%c0_1, %c0_2] : memref<16x32xf32, #tpu.memory_space<vmem>>, vector<16x32xf32>
    %c0_3 = arith.constant 0 : index
    %c0_4 = arith.constant 0 : index
    %c0_5 = arith.constant 0 : index
    %2 = vector.load %arg3[%c0_3, %c0_4, %c0_5] : memref<8x16x16xf32, #tpu.memory_space<vmem>>, vector<8x16x16xf32>
    %3 = vector.shape_cast %2 : vector<8x16x16xf32> to vector<128x16xf32>
    %cst = arith.constant dense<0.000000e+00> : vector<128x32xf32>
    %4 = tpu.matmul %3, %1, %cst {dimension_numbers = #tpu.dot_dimension_numbers<[1], [0], [0], [1], [0, 0, 1, 1], [], []>} : vector<128x16xf32>, vector<16x32xf32>, vector<128x32xf32> -> vector<128x32xf32>
    %5 = vector.shape_cast %4 : vector<128x32xf32> to vector<8x16x32xf32>
    %6 = vector.extract_strided_slice %5 {offsets = [0, 0, 0], sizes = [1, 16, 32], strides = [1, 1, 1]} : vector<8x16x32xf32> to vector<1x16x32xf32>
    %7 = vector.shape_cast %6 : vector<1x16x32xf32> to vector<16x32xf32>
    %cst_6 = arith.constant dense<0.000000e+00> : vector<32x32xf32>
    %8 = tpu.matmul %0, %7, %cst_6 {dimension_numbers = #tpu.dot_dimension_numbers<[1], [0], [0], [1], [0, 0, 1, 1], [], []>} : vector<32x16xf32>, vector<16x32xf32>, vector<32x32xf32> -> vector<32x32xf32>
    %c0_7 = arith.constant 0 : index
    %c0_8 = arith.constant 0 : index
    %c0_9 = arith.constant 0 : index
    %9 = vector.load %arg4[%c0_7, %c0_8, %c0_9] : memref<8x32x32xf32, #tpu.memory_space<vmem>>, vector<1x32x32xf32>
    %10 = vector.shape_cast %9 : vector<1x32x32xf32> to vector<32x32xf32>
    %11 = vector.shape_cast %8 : vector<32x32xf32> to vector<1x32x32xf32>
    tpu.vector_store %arg4[%c0_7, %c0_8, %c0_9], %11 {strides = array<i32>} : memref<8x32x32xf32, #tpu.memory_space<vmem>>, vector<1x32x32xf32>,
    %12 = vector.extract_strided_slice %5 {offsets = [1, 0, 0], sizes = [1, 16, 32], strides = [1, 1, 1]} : vector<8x16x32xf32> to vector<1x16x32xf32>
    %13 = vector.shape_cast %12 : vector<1x16x32xf32> to vector<16x32xf32>
    %cst_10 = arith.constant dense<0.000000e+00> : vector<32x32xf32>
    %14 = tpu.matmul %0, %13, %cst_10 {dimension_numbers = #tpu.dot_dimension_numbers<[1], [0], [0], [1], [0, 0, 1, 1], [], []>} : vector<32x16xf32>, vector<16x32xf32>, vector<32x32xf32> -> vector<32x32xf32>
    %c1 = arith.constant 1 : index
    %c0_11 = arith.constant 0 : index
    %c0_12 = arith.constant 0 : index
    %15 = vector.load %arg4[%c1, %c0_11, %c0_12] : memref<8x32x32xf32, #tpu.memory_space<vmem>>, vector<1x32x32xf32>
    %16 = vector.shape_cast %15 : vector<1x32x32xf32> to vector<32x32xf32>
    %17 = vector.shape_cast %14 : vector<32x32xf32> to vector<1x32x32xf32>
    tpu.vector_store %arg4[%c1, %c0_11, %c0_12], %17 {strides = array<i32>} : memref<8x32x32xf32, #tpu.memory_space<vmem>>, vector<1x32x32xf32>,
    %18 = vector.extract_strided_slice %5 {offsets = [2, 0, 0], sizes = [1, 16, 32], strides = [1, 1, 1]} : vector<8x16x32xf32> to vector<1x16x32xf32>
    %19 = vector.shape_cast %18 : vector<1x16x32xf32> to vector<16x32xf32>
    %cst_13 = arith.constant dense<0.000000e+00> : vector<32x32xf32>
    %20 = tpu.matmul %0, %19, %cst_13 {dimension_numbers = #tpu.dot_dimension_numbers<[1], [0], [0], [1], [0, 0, 1, 1], [], []>} : vector<32x16xf32>, vector<16x32xf32>, vector<32x32xf32> -> vector<32x32xf32>
    %c2 = arith.constant 2 : index
    %c0_14 = arith.constant 0 : index
    %c0_15 = arith.constant 0 : index
    %21 = vector.load %arg4[%c2, %c0_14, %c0_15] : memref<8x32x32xf32, #tpu.memory_space<vmem>>, vector<1x32x32xf32>
    %22 = vector.shape_cast %21 : vector<1x32x32xf32> to vector<32x32xf32>
    %23 = vector.shape_cast %20 : vector<32x32xf32> to vector<1x32x32xf32>
    tpu.vector_store %arg4[%c2, %c0_14, %c0_15], %23 {strides = array<i32>} : memref<8x32x32xf32, #tpu.memory_space<vmem>>, vector<1x32x32xf32>,
    %24 = vector.extract_strided_slice %5 {offsets = [3, 0, 0], sizes = [1, 16, 32], strides = [1, 1, 1]} : vector<8x16x32xf32> to vector<1x16x32xf32>
    %25 = vector.shape_cast %24 : vector<1x16x32xf32> to vector<16x32xf32>
    %cst_16 = arith.constant dense<0.000000e+00> : vector<32x32xf32>
    %26 = tpu.matmul %0, %25, %cst_16 {dimension_numbers = #tpu.dot_dimension_numbers<[1], [0], [0], [1], [0, 0, 1, 1], [], []>} : vector<32x16xf32>, vector<16x32xf32>, vector<32x32xf32> -> vector<32x32xf32>
    %c3 = arith.constant 3 : index
    %c0_17 = arith.constant 0 : index
    %c0_18 = arith.constant 0 : index
    %27 = vector.load %arg4[%c3, %c0_17, %c0_18] : memref<8x32x32xf32, #tpu.memory_space<vmem>>, vector<1x32x32xf32>
    %28 = vector.shape_cast %27 : vector<1x32x32xf32> to vector<32x32xf32>
    %29 = vector.shape_cast %26 : vector<32x32xf32> to vector<1x32x32xf32>
    tpu.vector_store %arg4[%c3, %c0_17, %c0_18], %29 {strides = array<i32>} : memref<8x32x32xf32, #tpu.memory_space<vmem>>, vector<1x32x32xf32>,
    %30 = vector.extract_strided_slice %5 {offsets = [4, 0, 0], sizes = [1, 16, 32], strides = [1, 1, 1]} : vector<8x16x32xf32> to vector<1x16x32xf32>
    %31 = vector.shape_cast %30 : vector<1x16x32xf32> to vector<16x32xf32>
    %cst_19 = arith.constant dense<0.000000e+00> : vector<32x32xf32>
    %32 = tpu.matmul %0, %31, %cst_19 {dimension_numbers = #tpu.dot_dimension_numbers<[1], [0], [0], [1], [0, 0, 1, 1], [], []>} : vector<32x16xf32>, vector<16x32xf32>, vector<32x32xf32> -> vector<32x32xf32>
    %c4 = arith.constant 4 : index
    %c0_20 = arith.constant 0 : index
    %c0_21 = arith.constant 0 : index
    %33 = vector.load %arg4[%c4, %c0_20, %c0_21] : memref<8x32x32xf32, #tpu.memory_space<vmem>>, vector<1x32x32xf32>
    %34 = vector.shape_cast %33 : vector<1x32x32xf32> to vector<32x32xf32>
    %35 = vector.shape_cast %32 : vector<32x32xf32> to vector<1x32x32xf32>
    tpu.vector_store %arg4[%c4, %c0_20, %c0_21], %35 {strides = array<i32>} : memref<8x32x32xf32, #tpu.memory_space<vmem>>, vector<1x32x32xf32>,
    %36 = vector.extract_strided_slice %5 {offsets = [5, 0, 0], sizes = [1, 16, 32], strides = [1, 1, 1]} : vector<8x16x32xf32> to vector<1x16x32xf32>
    %37 = vector.shape_cast %36 : vector<1x16x32xf32> to vector<16x32xf32>
    %cst_22 = arith.constant dense<0.000000e+00> : vector<32x32xf32>
    %38 = tpu.matmul %0, %37, %cst_22 {dimension_numbers = #tpu.dot_dimension_numbers<[1], [0], [0], [1], [0, 0, 1, 1], [], []>} : vector<32x16xf32>, vector<16x32xf32>, vector<32x32xf32> -> vector<32x32xf32>
    %c5 = arith.constant 5 : index
    %c0_23 = arith.constant 0 : index
    %c0_24 = arith.constant 0 : index
    %39 = vector.load %arg4[%c5, %c0_23, %c0_24] : memref<8x32x32xf32, #tpu.memory_space<vmem>>, vector<1x32x32xf32>
    %40 = vector.shape_cast %39 : vector<1x32x32xf32> to vector<32x32xf32>
    %41 = vector.shape_cast %38 : vector<32x32xf32> to vector<1x32x32xf32>
    tpu.vector_store %arg4[%c5, %c0_23, %c0_24], %41 {strides = array<i32>} : memref<8x32x32xf32, #tpu.memory_space<vmem>>, vector<1x32x32xf32>,
    %42 = vector.extract_strided_slice %5 {offsets = [6, 0, 0], sizes = [1, 16, 32], strides = [1, 1, 1]} : vector<8x16x32xf32> to vector<1x16x32xf32>
    %43 = vector.shape_cast %42 : vector<1x16x32xf32> to vector<16x32xf32>
    %cst_25 = arith.constant dense<0.000000e+00> : vector<32x32xf32>
    %44 = tpu.matmul %0, %43, %cst_25 {dimension_numbers = #tpu.dot_dimension_numbers<[1], [0], [0], [1], [0, 0, 1, 1], [], []>} : vector<32x16xf32>, vector<16x32xf32>, vector<32x32xf32> -> vector<32x32xf32>
    %c6 = arith.constant 6 : index
    %c0_26 = arith.constant 0 : index
    %c0_27 = arith.constant 0 : index
    %45 = vector.load %arg4[%c6, %c0_26, %c0_27] : memref<8x32x32xf32, #tpu.memory_space<vmem>>, vector<1x32x32xf32>
    %46 = vector.shape_cast %45 : vector<1x32x32xf32> to vector<32x32xf32>
    %47 = vector.shape_cast %44 : vector<32x32xf32> to vector<1x32x32xf32>
    tpu.vector_store %arg4[%c6, %c0_26, %c0_27], %47 {strides = array<i32>} : memref<8x32x32xf32, #tpu.memory_space<vmem>>, vector<1x32x32xf32>,
    %48 = vector.extract_strided_slice %5 {offsets = [7, 0, 0], sizes = [1, 16, 32], strides = [1, 1, 1]} : vector<8x16x32xf32> to vector<1x16x32xf32>
    %49 = vector.shape_cast %48 : vector<1x16x32xf32> to vector<16x32xf32>
    %cst_28 = arith.constant dense<0.000000e+00> : vector<32x32xf32>
    %50 = tpu.matmul %0, %49, %cst_28 {dimension_numbers = #tpu.dot_dimension_numbers<[1], [0], [0], [1], [0, 0, 1, 1], [], []>} : vector<32x16xf32>, vector<16x32xf32>, vector<32x32xf32> -> vector<32x32xf32>
    %c7 = arith.constant 7 : index
    %c0_29 = arith.constant 0 : index
    %c0_30 = arith.constant 0 : index
    %51 = vector.load %arg4[%c7, %c0_29, %c0_30] : memref<8x32x32xf32, #tpu.memory_space<vmem>>, vector<1x32x32xf32>
    %52 = vector.shape_cast %51 : vector<1x32x32xf32> to vector<32x32xf32>
    %53 = vector.shape_cast %50 : vector<32x32xf32> to vector<1x32x32xf32>
    tpu.vector_store %arg4[%c7, %c0_29, %c0_30], %53 {strides = array<i32>} : memref<8x32x32xf32, #tpu.memory_space<vmem>>, vector<1x32x32xf32>,
    return
  }
  func.func @transform_0(%arg0: i32) -> (i32, i32) {
    %c0_i32 = arith.constant 0 : i32
    %c0_i32_0 = arith.constant 0 : i32
    %c0_i32_1 = arith.constant 0 : i32
    return %c0_i32, %c0_i32_0 : i32, i32
  }
  func.func @transform_1(%arg0: i32) -> (i32, i32) {
    %c0_i32 = arith.constant 0 : i32
    %c0_i32_0 = arith.constant 0 : i32
    %c0_i32_1 = arith.constant 0 : i32
    return %c0_i32, %c0_i32_0 : i32, i32
  }
  func.func @transform_2(%arg0: i32) -> (i32, i32, i32) {
    %c0_i32 = arith.constant 0 : i32
    %c0_i32_0 = arith.constant 0 : i32
    %c0_i32_1 = arith.constant 0 : i32
    return %arg0, %c0_i32, %c0_i32_0 : i32, i32, i32
  }
  func.func @transform_3(%arg0: i32) -> (i32, i32, i32) {
    %c0_i32 = arith.constant 0 : i32
    %c0_i32_0 = arith.constant 0 : i32
    %c0_i32_1 = arith.constant 0 : i32
    return %arg0, %c0_i32, %c0_i32_0 : i32, i32, i32
  }
}

</mosaic_0001>

<llo_original>
// kernel: tpu_custom_call.1
$region0: #{tpu_custom_call.1}
  #allocation0 [shape = 'u32[]', space=smem, size = 0x4, offset = 0x4, fixed_abs, tag = 'smem constant byte address 0x4 - core index']
  #allocation1 [shape = 'u32[72,128]{1,0:T(1,128)}', space=vmem, size = 0x9000, scoped, tag = 'internal scratch']
  %s0 = inlined_call_operand.vmem [shape: f32[32,16], index: 0, kind: input, shape index: {}]
  %s1 = inlined_call_operand.vmem [shape: f32[16,32], index: 1, kind: input, shape index: {}]
  %s2 = inlined_call_operand.hbm [shape: f32[8,16,16], index: 2, kind: input, shape index: {}]
  %s3 = inlined_call_operand.hbm [shape: f32[8,32,32], index: 3, kind: output, shape index: {}]
  %s4 = sld [smem:[#allocation0]]
  $region26: #{tpu_custom_call.1} parent=0
    _
  %s6 = ssub.s32 1, %s4
  %s7 = scalar_select 0, %s6, %s4
  $region1: #{tpu_custom_call.1} parent=0
    #allocation2 [shape = 'u8[65536]{0}', space=vmem, size = 0x10000, scoped, tag = 'input window, operand 2, single buffered']
    #allocation3 [shape = 's32[1]{0}', space=sflag, size = 0x4, scoped, tag = 'scoped memory for tpu_custom_call.1']
    #allocation4 [shape = 's32[1]{0}', space=sflag, size = 0x4, scoped, tag = 'scoped memory for tpu_custom_call.1']
    #allocation5 [shape = 'u8[131072]{0}', space=vmem, size = 0x20000, scoped, tag = 'output window, operand 0, single buffered']
    %8 = vsyncpa [#allocation3], 0
    %9 = vsyncpa [#allocation4], 0
    // Predicated region
    $region2: #{tpu_custom_call.1} parent=1 // pred_check
      _
    $region3: #{tpu_custom_call.1} parent=1 // pred_check_branch
      %11 = sbr.rel (0) target = $region5
    $region4: #{tpu_custom_call.1} parent=1 // pred_region
      _
    $region5: #{tpu_custom_call.1} parent=1 // pred_fallthru
      _
    // Predicated region
    $region6: #{tpu_custom_call.1} parent=1 // pred_check
      _
    $region7: #{tpu_custom_call.1} parent=1 // pred_check_branch
      %13 = sbr.rel (0) target = $region9
    $region8: #{tpu_custom_call.1} parent=1 // pred_region
      _
    $region9: #{tpu_custom_call.1} parent=1 // pred_fallthru
      _
    // Predicated region
    $region10: #{tpu_custom_call.1} parent=1 // pred_check
      _
    $region11: #{tpu_custom_call.1} parent=1 // pred_check_branch
      %15 = sbr.rel (0) target = $region13
    $region12: #{tpu_custom_call.1} parent=1 // pred_region
      %17 = vsyncadd [#allocation3], 0
      %s18 = sshll.u32 %s2, 4
      %s19 = int_to_ptr.hbm [resolvable:$true] %s18
      %s20 = sshll.u32 [#allocation2], 4
      %s21 = int_to_ptr.vmem [resolvable:$true] %s20
      %26 = dma.hbm_to_vmem [thread:$0]  %s19, 2048, %s21, [#allocation3], 128, 128, 8
    $region13: #{tpu_custom_call.1} parent=1 // pred_fallthru
      _
    // Predicated region
    $region14: #{tpu_custom_call.1} parent=1 // pred_check
      _
    $region15: #{tpu_custom_call.1} parent=1 // pred_check_branch
      %28 = sbr.rel (0) target = $region17
    $region16: #{tpu_custom_call.1} parent=1 // pred_region
      %30 = dma.done [#allocation3], 2048
    $region17: #{tpu_custom_call.1} parent=1 // pred_fallthru
      _
    %v31 = vld [vmem:[%s0] sm:$0xff]
    %v32 = vld [vmem:[%s0 + $0x8] sm:$0xff]
    %v33 = vld [vmem:[%s0 + $0x10] sm:$0xff]
    %v34 = vld [vmem:[%s0 + $0x18] sm:$0xff]
    %v35 = vld [vmem:[%s1] sm:$0xff]
    %v36 = vld [vmem:[%s1 + $0x8] sm:$0xff]
    %v37 = vld [vmem:[#allocation2] sm:$0xff]
    %v38 = vld [vmem:[#allocation2 + $0x8] sm:$0xff]
    %v39 = vld [vmem:[#allocation2 + $0x10] sm:$0xff]
    %v40 = vld [vmem:[#allocation2 + $0x18] sm:$0xff]
    %v41 = vld [vmem:[#allocation2 + $0x20] sm:$0xff]
    %v42 = vld [vmem:[#allocation2 + $0x28] sm:$0xff]
    %v43 = vld [vmem:[#allocation2 + $0x30] sm:$0xff]
    %v44 = vld [vmem:[#allocation2 + $0x38] sm:$0xff]
    %v45 = vld [vmem:[#allocation2 + $0x40] sm:$0xff]
    %v46 = vld [vmem:[#allocation2 + $0x48] sm:$0xff]
    %v47 = vld [vmem:[#allocation2 + $0x50] sm:$0xff]
    %v48 = vld [vmem:[#allocation2 + $0x58] sm:$0xff]
    %v49 = vld [vmem:[#allocation2 + $0x60] sm:$0xff]
    %v50 = vld [vmem:[#allocation2 + $0x68] sm:$0xff]
    %v51 = vld [vmem:[#allocation2 + $0x70] sm:$0xff]
    %v52 = vld [vmem:[#allocation2 + $0x78] sm:$0xff]
    %vm53 = vcmask 130048
    %v55 = vsel %vm53, %v37, 0
    %v58 = vsel %vm53, %v38, 0
    %v61 = vsel %vm53, %v39, 0
    %v64 = vsel %vm53, %v40, 0
    %v67 = vsel %vm53, %v41, 0
    %v70 = vsel %vm53, %v42, 0
    %v73 = vsel %vm53, %v43, 0
    %v76 = vsel %vm53, %v44, 0
    %v79 = vsel %vm53, %v45, 0
    %v82 = vsel %vm53, %v46, 0
    %v85 = vsel %vm53, %v47, 0
    %v88 = vsel %vm53, %v48, 0
    %v91 = vsel %vm53, %v49, 0
    %v94 = vsel %vm53, %v50, 0
    %v97 = vsel %vm53, %v51, 0
    %v100 = vsel %vm53, %v52, 0
    %102 = vmatpush.msra.mxu0 0.0
    %103 = vmatpush.msra.mxu0 0.0
    %104 = vmatpush.msra.mxu0 0.0
    %105 = vmatpush.msra.mxu0 0.0
    %106 = vmatpush.msra.mxu0 0.0
    %107 = vmatpush.msra.mxu0 0.0
    %108 = vmatpush.msra.mxu0 0.0
    %109 = vmatpush.msra.mxu0 0.0
    %110 = vmatpush.msra.mxu0 0.0
    %111 = vmatpush.msra.mxu0 0.0
    %112 = vmatpush.msra.mxu0 0.0
    %113 = vmatpush.msra.mxu0 0.0
    %114 = vmatpush.msra.mxu0 0.0
    %115 = vmatpush.msra.mxu0 0.0
    %116 = vmatpush.msra.mxu0 %v36
    %117 = vmatpush.msra.mxu0 %v35
    %118 = vmatmul.f32.gmra.mxu0 %v55
    %v119 = vpop.f32.mrf.mxu0
    %v120 = vadd.f32 0.0, %v119
    %121 = vmatmul.f32.gmra.mxu0 %v58
    %v122 = vpop.f32.mrf.mxu0
    %v123 = vadd.f32 0.0, %v122
    %124 = vmatmul.f32.gmra.mxu0 %v61
    %v125 = vpop.f32.mrf.mxu0
    %v126 = vadd.f32 0.0, %v125
    %127 = vmatmul.f32.gmra.mxu0 %v64
    %v128 = vpop.f32.mrf.mxu0
    %v129 = vadd.f32 0.0, %v128
    %130 = vmatmul.f32.gmra.mxu0 %v67
    %v131 = vpop.f32.mrf.mxu0
    %v132 = vadd.f32 0.0, %v131
    %133 = vmatmul.f32.gmra.mxu0 %v70
    %v134 = vpop.f32.mrf.mxu0
    %v135 = vadd.f32 0.0, %v134
    %136 = vmatmul.f32.gmra.mxu0 %v73
    %v137 = vpop.f32.mrf.mxu0
    %v138 = vadd.f32 0.0, %v137
    %139 = vmatmul.f32.gmra.mxu0 %v76
    %v140 = vpop.f32.mrf.mxu0
    %v141 = vadd.f32 0.0, %v140
    %142 = vmatmul.f32.gmra.mxu0 %v79
    %v143 = vpop.f32.mrf.mxu0
    %v144 = vadd.f32 0.0, %v143
    %145 = vmatmul.f32.gmra.mxu0 %v82
    %v146 = vpop.f32.mrf.mxu0
    %v147 = vadd.f32 0.0, %v146
    %148 = vmatmul.f32.gmra.mxu0 %v85
    %v149 = vpop.f32.mrf.mxu0
    %v150 = vadd.f32 0.0, %v149
    %151 = vmatmul.f32.gmra.mxu0 %v88
    %v152 = vpop.f32.mrf.mxu0
    %v153 = vadd.f32 0.0, %v152
    %154 = vmatmul.f32.gmra.mxu0 %v91
    %v155 = vpop.f32.mrf.mxu0
    %v156 = vadd.f32 0.0, %v155
    %157 = vmatmul.f32.gmra.mxu0 %v94
    %v158 = vpop.f32.mrf.mxu0
    %v159 = vadd.f32 0.0, %v158
    %160 = vmatmul.f32.gmra.mxu0 %v97
    %v161 = vpop.f32.mrf.mxu0
    %v162 = vadd.f32 0.0, %v161
    %163 = vmatmul.f32.gmra.mxu0 %v100
    %v164 = vpop.f32.mrf.mxu0
    %v165 = vadd.f32 0.0, %v164
    %166 = vdwg.mxu0
    %v168 = vsel %vm53, %v31, 0
    %v171 = vsel %vm53, %v32, 0
    %v174 = vsel %vm53, %v33, 0
    %v177 = vsel %vm53, %v34, 0
    %179 = vmatpush.msra.mxu0 0.0
    %180 = vmatpush.msra.mxu0 0.0
    %181 = vmatpush.msra.mxu0 0.0
    %182 = vmatpush.msra.mxu0 0.0
    %183 = vmatpush.msra.mxu0 0.0
    %184 = vmatpush.msra.mxu0 0.0
    %185 = vmatpush.msra.mxu0 0.0
    %186 = vmatpush.msra.mxu0 0.0
    %187 = vmatpush.msra.mxu0 0.0
    %188 = vmatpush.msra.mxu0 0.0
    %189 = vmatpush.msra.mxu0 0.0
    %190 = vmatpush.msra.mxu0 0.0
    %191 = vmatpush.msra.mxu0 0.0
    %192 = vmatpush.msra.mxu0 0.0
    %193 = vmatpush.msra.mxu0 %v123
    %194 = vmatpush.msra.mxu0 %v120
    %195 = vmatmul.f32.gmra.mxu0 %v168
    %v196 = vpop.f32.mrf.mxu0
    %v197 = vadd.f32 0.0, %v196
    %198 = vmatmul.f32.gmra.mxu0 %v171
    %v199 = vpop.f32.mrf.mxu0
    %v200 = vadd.f32 0.0, %v199
    %201 = vmatmul.f32.gmra.mxu0 %v174
    %v202 = vpop.f32.mrf.mxu0
    %v203 = vadd.f32 0.0, %v202
    %204 = vmatmul.f32.gmra.mxu0 %v177
    %v205 = vpop.f32.mrf.mxu0
    %v206 = vadd.f32 0.0, %v205
    %207 = vdwg.mxu0
    %vm208 = vcmask 261120
    %209 = vst.msk [vmem:[#allocation5] sm:$0xff] %vm208, %v197
    %210 = vst.msk [vmem:[#allocation5 + $0x8] sm:$0xff] %vm208, %v200
    %211 = vst.msk [vmem:[#allocation5 + $0x10] sm:$0xff] %vm208, %v203
    %212 = vst.msk [vmem:[#allocation5 + $0x18] sm:$0xff] %vm208, %v206
    %213 = vmatpush.msra.mxu0 0.0
    %214 = vmatpush.msra.mxu0 0.0
    %215 = vmatpush.msra.mxu0 0.0
    %216 = vmatpush.msra.mxu0 0.0
    %217 = vmatpush.msra.mxu0 0.0
    %218 = vmatpush.msra.mxu0 0.0
    %219 = vmatpush.msra.mxu0 0.0
    %220 = vmatpush.msra.mxu0 0.0
    %221 = vmatpush.msra.mxu0 0.0
    %222 = vmatpush.msra.mxu0 0.0
    %223 = vmatpush.msra.mxu0 0.0
    %224 = vmatpush.msra.mxu0 0.0
    %225 = vmatpush.msra.mxu0 0.0
    %226 = vmatpush.msra.mxu0 0.0
    %227 = vmatpush.msra.mxu0 %v129
    %228 = vmatpush.msra.mxu0 %v126
    %229 = vmatmul.f32.gmra.mxu0 %v168
    %v230 = vpop.f32.mrf.mxu0
    %v231 = vadd.f32 0.0, %v230
    %232 = vmatmul.f32.gmra.mxu0 %v171
    %v233 = vpop.f32.mrf.mxu0
    %v234 = vadd.f32 0.0, %v233
    %235 = vmatmul.f32.gmra.mxu0 %v174
    %v236 = vpop.f32.mrf.mxu0
    %v237 = vadd.f32 0.0, %v236
    %238 = vmatmul.f32.gmra.mxu0 %v177
    %v239 = vpop.f32.mrf.mxu0
    %v240 = vadd.f32 0.0, %v239
    %241 = vdwg.mxu0
    %s242 = scalar_lea.vmem [#allocation5], 32
    %243 = vst.msk [vmem:[%s242] sm:$0xff] %vm208, %v231
    %244 = vst.msk [vmem:[%s242 + $0x8] sm:$0xff] %vm208, %v234
    %245 = vst.msk [vmem:[%s242 + $0x10] sm:$0xff] %vm208, %v237
    %246 = vst.msk [vmem:[%s242 + $0x18] sm:$0xff] %vm208, %v240
    %247 = vmatpush.msra.mxu0 0.0
    %248 = vmatpush.msra.mxu0 0.0
    %249 = vmatpush.msra.mxu0 0.0
    %250 = vmatpush.msra.mxu0 0.0
    %251 = vmatpush.msra.mxu0 0.0
    %252 = vmatpush.msra.mxu0 0.0
    %253 = vmatpush.msra.mxu0 0.0
    %254 = vmatpush.msra.mxu0 0.0
    %255 = vmatpush.msra.mxu0 0.0
    %256 = vmatpush.msra.mxu0 0.0
    %257 = vmatpush.msra.mxu0 0.0
    %258 = vmatpush.msra.mxu0 0.0
    %259 = vmatpush.msra.mxu0 0.0
    %260 = vmatpush.msra.mxu0 0.0
    %261 = vmatpush.msra.mxu0 %v135
    %262 = vmatpush.msra.mxu0 %v132
    %263 = vmatmul.f32.gmra.mxu0 %v168
    %v264 = vpop.f32.mrf.mxu0
    %v265 = vadd.f32 0.0, %v264
    %266 = vmatmul.f32.gmra.mxu0 %v171
    %v267 = vpop.f32.mrf.mxu0
    %v268 = vadd.f32 0.0, %v267
    %269 = vmatmul.f32.gmra.mxu0 %v174
    %v270 = vpop.f32.mrf.mxu0
    %v271 = vadd.f32 0.0, %v270
    %272 = vmatmul.f32.gmra.mxu0 %v177
    %v273 = vpop.f32.mrf.mxu0
    %v274 = vadd.f32 0.0, %v273
    %275 = vdwg.mxu0
    %s276 = scalar_lea.vmem [#allocation5], 64
    %277 = vst.msk [vmem:[%s276] sm:$0xff] %vm208, %v265
    %278 = vst.msk [vmem:[%s276 + $0x8] sm:$0xff] %vm208, %v268
    %279 = vst.msk [vmem:[%s276 + $0x10] sm:$0xff] %vm208, %v271
    %280 = vst.msk [vmem:[%s276 + $0x18] sm:$0xff] %vm208, %v274
    %281 = vmatpush.msra.mxu0 0.0
    %282 = vmatpush.msra.mxu0 0.0
    %283 = vmatpush.msra.mxu0 0.0
    %284 = vmatpush.msra.mxu0 0.0
    %285 = vmatpush.msra.mxu0 0.0
    %286 = vmatpush.msra.mxu0 0.0
    %287 = vmatpush.msra.mxu0 0.0
    %288 = vmatpush.msra.mxu0 0.0
    %289 = vmatpush.msra.mxu0 0.0
    %290 = vmatpush.msra.mxu0 0.0
    %291 = vmatpush.msra.mxu0 0.0
    %292 = vmatpush.msra.mxu0 0.0
    %293 = vmatpush.msra.mxu0 0.0
    %294 = vmatpush.msra.mxu0 0.0
    %295 = vmatpush.msra.mxu0 %v141
    %296 = vmatpush.msra.mxu0 %v138
    %297 = vmatmul.f32.gmra.mxu0 %v168
    %v298 = vpop.f32.mrf.mxu0
    %v299 = vadd.f32 0.0, %v298
    %300 = vmatmul.f32.gmra.mxu0 %v171
    %v301 = vpop.f32.mrf.mxu0
    %v302 = vadd.f32 0.0, %v301
    %303 = vmatmul.f32.gmra.mxu0 %v174
    %v304 = vpop.f32.mrf.mxu0
    %v305 = vadd.f32 0.0, %v304
    %306 = vmatmul.f32.gmra.mxu0 %v177
    %v307 = vpop.f32.mrf.mxu0
    %v308 = vadd.f32 0.0, %v307
    %309 = vdwg.mxu0
    %s310 = scalar_lea.vmem [#allocation5], 96
    %311 = vst.msk [vmem:[%s310] sm:$0xff] %vm208, %v299
    %312 = vst.msk [vmem:[%s310 + $0x8] sm:$0xff] %vm208, %v302
    %313 = vst.msk [vmem:[%s310 + $0x10] sm:$0xff] %vm208, %v305
    %314 = vst.msk [vmem:[%s310 + $0x18] sm:$0xff] %vm208, %v308
    %315 = vmatpush.msra.mxu0 0.0
    %316 = vmatpush.msra.mxu0 0.0
    %317 = vmatpush.msra.mxu0 0.0
    %318 = vmatpush.msra.mxu0 0.0
    %319 = vmatpush.msra.mxu0 0.0
    %320 = vmatpush.msra.mxu0 0.0
    %321 = vmatpush.msra.mxu0 0.0
    %322 = vmatpush.msra.mxu0 0.0
    %323 = vmatpush.msra.mxu0 0.0
    %324 = vmatpush.msra.mxu0 0.0
    %325 = vmatpush.msra.mxu0 0.0
    %326 = vmatpush.msra.mxu0 0.0
    %327 = vmatpush.msra.mxu0 0.0
    %328 = vmatpush.msra.mxu0 0.0
    %329 = vmatpush.msra.mxu0 %v147
    %330 = vmatpush.msra.mxu0 %v144
    %331 = vmatmul.f32.gmra.mxu0 %v168
    %v332 = vpop.f32.mrf.mxu0
    %v333 = vadd.f32 0.0, %v332
    %334 = vmatmul.f32.gmra.mxu0 %v171
    %v335 = vpop.f32.mrf.mxu0
    %v336 = vadd.f32 0.0, %v335
    %337 = vmatmul.f32.gmra.mxu0 %v174
    %v338 = vpop.f32.mrf.mxu0
    %v339 = vadd.f32 0.0, %v338
    %340 = vmatmul.f32.gmra.mxu0 %v177
    %v341 = vpop.f32.mrf.mxu0
    %v342 = vadd.f32 0.0, %v341
    %343 = vdwg.mxu0
    %s344 = scalar_lea.vmem [#allocation5], 128
    %345 = vst.msk [vmem:[%s344] sm:$0xff] %vm208, %v333
    %346 = vst.msk [vmem:[%s344 + $0x8] sm:$0xff] %vm208, %v336
    %347 = vst.msk [vmem:[%s344 + $0x10] sm:$0xff] %vm208, %v339
    %348 = vst.msk [vmem:[%s344 + $0x18] sm:$0xff] %vm208, %v342
    %349 = vmatpush.msra.mxu0 0.0
    %350 = vmatpush.msra.mxu0 0.0
    %351 = vmatpush.msra.mxu0 0.0
    %352 = vmatpush.msra.mxu0 0.0
    %353 = vmatpush.msra.mxu0 0.0
    %354 = vmatpush.msra.mxu0 0.0
    %355 = vmatpush.msra.mxu0 0.0
    %356 = vmatpush.msra.mxu0 0.0
    %357 = vmatpush.msra.mxu0 0.0
    %358 = vmatpush.msra.mxu0 0.0
    %359 = vmatpush.msra.mxu0 0.0
    %360 = vmatpush.msra.mxu0 0.0
    %361 = vmatpush.msra.mxu0 0.0
    %362 = vmatpush.msra.mxu0 0.0
    %363 = vmatpush.msra.mxu0 %v153
    %364 = vmatpush.msra.mxu0 %v150
    %365 = vmatmul.f32.gmra.mxu0 %v168
    %v366 = vpop.f32.mrf.mxu0
    %v367 = vadd.f32 0.0, %v366
    %368 = vmatmul.f32.gmra.mxu0 %v171
    %v369 = vpop.f32.mrf.mxu0
    %v370 = vadd.f32 0.0, %v369
    %371 = vmatmul.f32.gmra.mxu0 %v174
    %v372 = vpop.f32.mrf.mxu0
    %v373 = vadd.f32 0.0, %v372
    %374 = vmatmul.f32.gmra.mxu0 %v177
    %v375 = vpop.f32.mrf.mxu0
    %v376 = vadd.f32 0.0, %v375
    %377 = vdwg.mxu0
    %s378 = scalar_lea.vmem [#allocation5], 160
    %379 = vst.msk [vmem:[%s378] sm:$0xff] %vm208, %v367
    %380 = vst.msk [vmem:[%s378 + $0x8] sm:$0xff] %vm208, %v370
    %381 = vst.msk [vmem:[%s378 + $0x10] sm:$0xff] %vm208, %v373
    %382 = vst.msk [vmem:[%s378 + $0x18] sm:$0xff] %vm208, %v376
    %383 = vmatpush.msra.mxu0 0.0
    %384 = vmatpush.msra.mxu0 0.0
    %385 = vmatpush.msra.mxu0 0.0
    %386 = vmatpush.msra.mxu0 0.0
    %387 = vmatpush.msra.mxu0 0.0
    %388 = vmatpush.msra.mxu0 0.0
    %389 = vmatpush.msra.mxu0 0.0
    %390 = vmatpush.msra.mxu0 0.0
    %391 = vmatpush.msra.mxu0 0.0
    %392 = vmatpush.msra.mxu0 0.0
    %393 = vmatpush.msra.mxu0 0.0
    %394 = vmatpush.msra.mxu0 0.0
    %395 = vmatpush.msra.mxu0 0.0
    %396 = vmatpush.msra.mxu0 0.0
    %397 = vmatpush.msra.mxu0 %v159
    %398 = vmatpush.msra.mxu0 %v156
    %399 = vmatmul.f32.gmra.mxu0 %v168
    %v400 = vpop.f32.mrf.mxu0
    %v401 = vadd.f32 0.0, %v400
    %402 = vmatmul.f32.gmra.mxu0 %v171
    %v403 = vpop.f32.mrf.mxu0
    %v404 = vadd.f32 0.0, %v403
    %405 = vmatmul.f32.gmra.mxu0 %v174
    %v406 = vpop.f32.mrf.mxu0
    %v407 = vadd.f32 0.0, %v406
    %408 = vmatmul.f32.gmra.mxu0 %v177
    %v409 = vpop.f32.mrf.mxu0
    %v410 = vadd.f32 0.0, %v409
    %411 = vdwg.mxu0
    %s412 = scalar_lea.vmem [#allocation5], 192
    %413 = vst.msk [vmem:[%s412] sm:$0xff] %vm208, %v401
    %414 = vst.msk [vmem:[%s412 + $0x8] sm:$0xff] %vm208, %v404
    %415 = vst.msk [vmem:[%s412 + $0x10] sm:$0xff] %vm208, %v407
    %416 = vst.msk [vmem:[%s412 + $0x18] sm:$0xff] %vm208, %v410
    %417 = vmatpush.msra.mxu0 0.0
    %418 = vmatpush.msra.mxu0 0.0
    %419 = vmatpush.msra.mxu0 0.0
    %420 = vmatpush.msra.mxu0 0.0
    %421 = vmatpush.msra.mxu0 0.0
    %422 = vmatpush.msra.mxu0 0.0
    %423 = vmatpush.msra.mxu0 0.0
    %424 = vmatpush.msra.mxu0 0.0
    %425 = vmatpush.msra.mxu0 0.0
    %426 = vmatpush.msra.mxu0 0.0
    %427 = vmatpush.msra.mxu0 0.0
    %428 = vmatpush.msra.mxu0 0.0
    %429 = vmatpush.msra.mxu0 0.0
    %430 = vmatpush.msra.mxu0 0.0
    %431 = vmatpush.msra.mxu0 %v165
    %432 = vmatpush.msra.mxu0 %v162
    %433 = vmatmul.f32.gmra.mxu0 %v168
    %v434 = vpop.f32.mrf.mxu0
    %v435 = vadd.f32 0.0, %v434
    %436 = vmatmul.f32.gmra.mxu0 %v171
    %v437 = vpop.f32.mrf.mxu0
    %v438 = vadd.f32 0.0, %v437
    %439 = vmatmul.f32.gmra.mxu0 %v174
    %v440 = vpop.f32.mrf.mxu0
    %v441 = vadd.f32 0.0, %v440
    %442 = vmatmul.f32.gmra.mxu0 %v177
    %v443 = vpop.f32.mrf.mxu0
    %v444 = vadd.f32 0.0, %v443
    %445 = vdwg.mxu0
    %s446 = scalar_lea.vmem [#allocation5], 224
    %447 = vst.msk [vmem:[%s446] sm:$0xff] %vm208, %v435
    %448 = vst.msk [vmem:[%s446 + $0x8] sm:$0xff] %vm208, %v438
    %449 = vst.msk [vmem:[%s446 + $0x10] sm:$0xff] %vm208, %v441
    %450 = vst.msk [vmem:[%s446 + $0x18] sm:$0xff] %vm208, %v444
    // Predicated region
    $region18: #{tpu_custom_call.1} parent=1 // pred_check
      _
    $region19: #{tpu_custom_call.1} parent=1 // pred_check_branch
      %452 = sbr.rel (0) target = $region21
    $region20: #{tpu_custom_call.1} parent=1 // pred_region
      %454 = vsyncadd [#allocation4], 0
      %s455 = sshll.u32 [#allocation5], 4
      %s456 = int_to_ptr.vmem [resolvable:$true] %s455
      %s457 = sshll.u32 %s3, 4
      %s458 = int_to_ptr.hbm [resolvable:$true] %s457
      %463 = dma.vmem_to_hbm [thread:$0]  %s456, 4096, %s458, [#allocation4], 128, 128, 8
    $region21: #{tpu_custom_call.1} parent=1 // pred_fallthru
      _
    // Predicated region
    $region22: #{tpu_custom_call.1} parent=1 // pred_check
      _
    $region23: #{tpu_custom_call.1} parent=1 // pred_check_branch
      %465 = sbr.rel (0) target = $region25
    $region24: #{tpu_custom_call.1} parent=1 // pred_region
      %467 = dma.done [#allocation4], 4096
    $region25: #{tpu_custom_call.1} parent=1 // pred_fallthru
      _
    %468 = vsyncpa [#allocation3], 1
    %469 = vsyncpa [#allocation4], 1

// kernel: tpu_custom_call.1
$region0: #{tpu_custom_call.1}
  #allocation0 [shape = 'u32[]', space=smem, size = 0x4, offset = 0x4, fixed_abs, tag = 'smem constant byte address 0x4 - core index']
  #allocation1 [shape = 'u32[72,128]{1,0:T(1,128)}', space=vmem, size = 0x9000, scoped, tag = 'internal scratch']
  %s0 = inlined_call_operand.vmem [shape: f32[32,16], index: 0, kind: input, shape index: {}]
  %s1 = inlined_call_operand.vmem [shape: f32[16,32], index: 1, kind: input, shape index: {}]
  %s2 = inlined_call_operand.hbm [shape: f32[8,16,16], index: 2, kind: input, shape index: {}]
  %s3 = inlined_call_operand.hbm [shape: f32[8,32,32], index: 3, kind: output, shape index: {}]
  %s4 = sld [smem:[#allocation0]]
  $region26: #{tpu_custom_call.1} parent=0
    _
  %s6 = ssub.s32 1, %s4
  %s7 = scalar_select 0, %s6, %s4
  $region1: #{tpu_custom_call.1} parent=0
    #allocation2 [shape = 'u8[65536]{0}', space=vmem, size = 0x10000, scoped, tag = 'input window, operand 2, single buffered']
    #allocation3 [shape = 's32[1]{0}', space=sflag, size = 0x4, scoped, tag = 'scoped memory for tpu_custom_call.1']
    #allocation4 [shape = 's32[1]{0}', space=sflag, size = 0x4, scoped, tag = 'scoped memory for tpu_custom_call.1']
    #allocation5 [shape = 'u8[131072]{0}', space=vmem, size = 0x20000, scoped, tag = 'output window, operand 0, single buffered']
    %8 = vsyncpa [#allocation3], 0
    %9 = vsyncpa [#allocation4], 0
    // Predicated region
    $region2: #{tpu_custom_call.1} parent=1 // pred_check
      _
    $region3: #{tpu_custom_call.1} parent=1 // pred_check_branch
      %11 = sbr.rel (0) target = $region5
    $region4: #{tpu_custom_call.1} parent=1 // pred_region
      _
    $region5: #{tpu_custom_call.1} parent=1 // pred_fallthru
      _
    // Predicated region
    $region6: #{tpu_custom_call.1} parent=1 // pred_check
      _
    $region7: #{tpu_custom_call.1} parent=1 // pred_check_branch
      %13 = sbr.rel (0) target = $region9
    $region8: #{tpu_custom_call.1} parent=1 // pred_region
      _
    $region9: #{tpu_custom_call.1} parent=1 // pred_fallthru
      _
    // Predicated region
    $region10: #{tpu_custom_call.1} parent=1 // pred_check
      _
    $region11: #{tpu_custom_call.1} parent=1 // pred_check_branch
      %15 = sbr.rel (0) target = $region13
    $region12: #{tpu_custom_call.1} parent=1 // pred_region
      %17 = vsyncadd [#allocation3], 0
      %s18 = sshll.u32 %s2, 4
      %s19 = int_to_ptr.hbm [resolvable:$true] %s18
      %s20 = sshll.u32 [#allocation2], 4
      %s21 = int_to_ptr.vmem [resolvable:$true] %s20
      %26 = dma.hbm_to_vmem [thread:$0]  %s19, 2048, %s21, [#allocation3], 128, 128, 8
    $region13: #{tpu_custom_call.1} parent=1 // pred_fallthru
      _
    // Predicated region
    $region14: #{tpu_custom_call.1} parent=1 // pred_check
      _
    $region15: #{tpu_custom_call.1} parent=1 // pred_check_branch
      %28 = sbr.rel (0) target = $region17
    $region16: #{tpu_custom_call.1} parent=1 // pred_region
      %30 = dma.done [#allocation3], 2048
    $region17: #{tpu_custom_call.1} parent=1 // pred_fallthru
      _
    %v31 = vld [vmem:[%s0] sm:$0xff]
    %v32 = vld [vmem:[%s0 + $0x8] sm:$0xff]
    %v33 = vld [vmem:[%s0 + $0x10] sm:$0xff]
    %v34 = vld [vmem:[%s0 + $0x18] sm:$0xff]
    %v35 = vld [vmem:[%s1] sm:$0xff]
    %v36 = vld [vmem:[%s1 + $0x8] sm:$0xff]
    %v37 = vld [vmem:[#allocation2] sm:$0xff]
    %v38 = vld [vmem:[#allocation2 + $0x8] sm:$0xff]
    %v39 = vld [vmem:[#allocation2 + $0x10] sm:$0xff]
    %v40 = vld [vmem:[#allocation2 + $0x18] sm:$0xff]
    %v41 = vld [vmem:[#allocation2 + $0x20] sm:$0xff]
    %v42 = vld [vmem:[#allocation2 + $0x28] sm:$0xff]
    %v43 = vld [vmem:[#allocation2 + $0x30] sm:$0xff]
    %v44 = vld [vmem:[#allocation2 + $0x38] sm:$0xff]
    %v45 = vld [vmem:[#allocation2 + $0x40] sm:$0xff]
    %v46 = vld [vmem:[#allocation2 + $0x48] sm:$0xff]
    %v47 = vld [vmem:[#allocation2 + $0x50] sm:$0xff]
    %v48 = vld [vmem:[#allocation2 + $0x58] sm:$0xff]
    %v49 = vld [vmem:[#allocation2 + $0x60] sm:$0xff]
    %v50 = vld [vmem:[#allocation2 + $0x68] sm:$0xff]
    %v51 = vld [vmem:[#allocation2 + $0x70] sm:$0xff]
    %v52 = vld [vmem:[#allocation2 + $0x78] sm:$0xff]
    %vm53 = vcmask 130048
    %v55 = vsel %vm53, %v37, 0
    %v58 = vsel %vm53, %v38, 0
    %v61 = vsel %vm53, %v39, 0
    %v64 = vsel %vm53, %v40, 0
    %v67 = vsel %vm53, %v41, 0
    %v70 = vsel %vm53, %v42, 0
    %v73 = vsel %vm53, %v43, 0
    %v76 = vsel %vm53, %v44, 0
    %v79 = vsel %vm53, %v45, 0
    %v82 = vsel %vm53, %v46, 0
    %v85 = vsel %vm53, %v47, 0
    %v88 = vsel %vm53, %v48, 0
    %v91 = vsel %vm53, %v49, 0
    %v94 = vsel %vm53, %v50, 0
    %v97 = vsel %vm53, %v51, 0
    %v100 = vsel %vm53, %v52, 0
    %102 = vmatpush.msra.mxu0 0.0
    %103 = vmatpush.msra.mxu0 0.0
    %104 = vmatpush.msra.mxu0 0.0
    %105 = vmatpush.msra.mxu0 0.0
    %106 = vmatpush.msra.mxu0 0.0
    %107 = vmatpush.msra.mxu0 0.0
    %108 = vmatpush.msra.mxu0 0.0
    %109 = vmatpush.msra.mxu0 0.0
    %110 = vmatpush.msra.mxu0 0.0
    %111 = vmatpush.msra.mxu0 0.0
    %112 = vmatpush.msra.mxu0 0.0
    %113 = vmatpush.msra.mxu0 0.0
    %114 = vmatpush.msra.mxu0 0.0
    %115 = vmatpush.msra.mxu0 0.0
    %116 = vmatpush.msra.mxu0 %v36
    %117 = vmatpush.msra.mxu0 %v35
    %118 = vmatmul.f32.gmra.mxu0 %v55
    %v119 = vpop.f32.mrf.mxu0
    %v120 = vadd.f32 0.0, %v119
    %121 = vmatmul.f32.gmra.mxu0 %v58
    %v122 = vpop.f32.mrf.mxu0
    %v123 = vadd.f32 0.0, %v122
    %124 = vmatmul.f32.gmra.mxu0 %v61
    %v125 = vpop.f32.mrf.mxu0
    %v126 = vadd.f32 0.0, %v125
    %127 = vmatmul.f32.gmra.mxu0 %v64
    %v128 = vpop.f32.mrf.mxu0
    %v129 = vadd.f32 0.0, %v128
    %130 = vmatmul.f32.gmra.mxu0 %v67
    %v131 = vpop.f32.mrf.mxu0
    %v132 = vadd.f32 0.0, %v131
    %133 = vmatmul.f32.gmra.mxu0 %v70
    %v134 = vpop.f32.mrf.mxu0
    %v135 = vadd.f32 0.0, %v134
    %136 = vmatmul.f32.gmra.mxu0 %v73
    %v137 = vpop.f32.mrf.mxu0
    %v138 = vadd.f32 0.0, %v137
    %139 = vmatmul.f32.gmra.mxu0 %v76
    %v140 = vpop.f32.mrf.mxu0
    %v141 = vadd.f32 0.0, %v140
    %142 = vmatmul.f32.gmra.mxu0 %v79
    %v143 = vpop.f32.mrf.mxu0
    %v144 = vadd.f32 0.0, %v143
    %145 = vmatmul.f32.gmra.mxu0 %v82
    %v146 = vpop.f32.mrf.mxu0
    %v147 = vadd.f32 0.0, %v146
    %148 = vmatmul.f32.gmra.mxu0 %v85
    %v149 = vpop.f32.mrf.mxu0
    %v150 = vadd.f32 0.0, %v149
    %151 = vmatmul.f32.gmra.mxu0 %v88
    %v152 = vpop.f32.mrf.mxu0
    %v153 = vadd.f32 0.0, %v152
    %154 = vmatmul.f32.gmra.mxu0 %v91
    %v155 = vpop.f32.mrf.mxu0
    %v156 = vadd.f32 0.0, %v155
    %157 = vmatmul.f32.gmra.mxu0 %v94
    %v158 = vpop.f32.mrf.mxu0
    %v159 = vadd.f32 0.0, %v158
    %160 = vmatmul.f32.gmra.mxu0 %v97
    %v161 = vpop.f32.mrf.mxu0
    %v162 = vadd.f32 0.0, %v161
    %163 = vmatmul.f32.gmra.mxu0 %v100
    %v164 = vpop.f32.mrf.mxu0
    %v165 = vadd.f32 0.0, %v164
    %166 = vdwg.mxu0
    %v168 = vsel %vm53, %v31, 0
    %v171 = vsel %vm53, %v32, 0
    %v174 = vsel %vm53, %v33, 0
    %v177 = vsel %vm53, %v34, 0
    %179 = vmatpush.msra.mxu0 0.0
    %180 = vmatpush.msra.mxu0 0.0
    %181 = vmatpush.msra.mxu0 0.0
    %182 = vmatpush.msra.mxu0 0.0
    %183 = vmatpush.msra.mxu0 0.0
    %184 = vmatpush.msra.mxu0 0.0
    %185 = vmatpush.msra.mxu0 0.0
    %186 = vmatpush.msra.mxu0 0.0
    %187 = vmatpush.msra.mxu0 0.0
    %188 = vmatpush.msra.mxu0 0.0
    %189 = vmatpush.msra.mxu0 0.0
    %190 = vmatpush.msra.mxu0 0.0
    %191 = vmatpush.msra.mxu0 0.0
    %192 = vmatpush.msra.mxu0 0.0
    %193 = vmatpush.msra.mxu0 %v123
    %194 = vmatpush.msra.mxu0 %v120
    %195 = vmatmul.f32.gmra.mxu0 %v168
    %v196 = vpop.f32.mrf.mxu0
    %v197 = vadd.f32 0.0, %v196
    %198 = vmatmul.f32.gmra.mxu0 %v171
    %v199 = vpop.f32.mrf.mxu0
    %v200 = vadd.f32 0.0, %v199
    %201 = vmatmul.f32.gmra.mxu0 %v174
    %v202 = vpop.f32.mrf.mxu0
    %v203 = vadd.f32 0.0, %v202
    %204 = vmatmul.f32.gmra.mxu0 %v177
    %v205 = vpop.f32.mrf.mxu0
    %v206 = vadd.f32 0.0, %v205
    %207 = vdwg.mxu0
    %vm208 = vcmask 261120
    %209 = vst.msk [vmem:[#allocation5] sm:$0xff] %vm208, %v197
    %210 = vst.msk [vmem:[#allocation5 + $0x8] sm:$0xff] %vm208, %v200
    %211 = vst.msk [vmem:[#allocation5 + $0x10] sm:$0xff] %vm208, %v203
    %212 = vst.msk [vmem:[#allocation5 + $0x18] sm:$0xff] %vm208, %v206
    %213 = vmatpush.msra.mxu0 0.0
    %214 = vmatpush.msra.mxu0 0.0
    %215 = vmatpush.msra.mxu0 0.0
    %216 = vmatpush.msra.mxu0 0.0
    %217 = vmatpush.msra.mxu0 0.0
    %218 = vmatpush.msra.mxu0 0.0
    %219 = vmatpush.msra.mxu0 0.0
    %220 = vmatpush.msra.mxu0 0.0
    %221 = vmatpush.msra.mxu0 0.0
    %222 = vmatpush.msra.mxu0 0.0
    %223 = vmatpush.msra.mxu0 0.0
    %224 = vmatpush.msra.mxu0 0.0
    %225 = vmatpush.msra.mxu0 0.0
    %226 = vmatpush.msra.mxu0 0.0
    %227 = vmatpush.msra.mxu0 %v129
    %228 = vmatpush.msra.mxu0 %v126
    %229 = vmatmul.f32.gmra.mxu0 %v168
    %v230 = vpop.f32.mrf.mxu0
    %v231 = vadd.f32 0.0, %v230
    %232 = vmatmul.f32.gmra.mxu0 %v171
    %v233 = vpop.f32.mrf.mxu0
    %v234 = vadd.f32 0.0, %v233
    %235 = vmatmul.f32.gmra.mxu0 %v174
    %v236 = vpop.f32.mrf.mxu0
    %v237 = vadd.f32 0.0, %v236
    %238 = vmatmul.f32.gmra.mxu0 %v177
    %v239 = vpop.f32.mrf.mxu0
    %v240 = vadd.f32 0.0, %v239
    %241 = vdwg.mxu0
    %s242 = scalar_lea.vmem [#allocation5], 32
    %243 = vst.msk [vmem:[%s242] sm:$0xff] %vm208, %v231
    %244 = vst.msk [vmem:[%s242 + $0x8] sm:$0xff] %vm208, %v234
    %245 = vst.msk [vmem:[%s242 + $0x10] sm:$0xff] %vm208, %v237
    %246 = vst.msk [vmem:[%s242 + $0x18] sm:$0xff] %vm208, %v240
    %247 = vmatpush.msra.mxu0 0.0
    %248 = vmatpush.msra.mxu0 0.0
    %249 = vmatpush.msra.mxu0 0.0
    %250 = vmatpush.msra.mxu0 0.0
    %251 = vmatpush.msra.mxu0 0.0
    %252 = vmatpush.msra.mxu0 0.0
    %253 = vmatpush.msra.mxu0 0.0
    %254 = vmatpush.msra.mxu0 0.0
    %255 = vmatpush.msra.mxu0 0.0
    %256 = vmatpush.msra.mxu0 0.0
    %257 = vmatpush.msra.mxu0 0.0
    %258 = vmatpush.msra.mxu0 0.0
    %259 = vmatpush.msra.mxu0 0.0
    %260 = vmatpush.msra.mxu0 0.0
    %261 = vmatpush.msra.mxu0 %v135
    %262 = vmatpush.msra.mxu0 %v132
    %263 = vmatmul.f32.gmra.mxu0 %v168
    %v264 = vpop.f32.mrf.mxu0
    %v265 = vadd.f32 0.0, %v264
    %266 = vmatmul.f32.gmra.mxu0 %v171
    %v267 = vpop.f32.mrf.mxu0
    %v268 = vadd.f32 0.0, %v267
    %269 = vmatmul.f32.gmra.mxu0 %v174
    %v270 = vpop.f32.mrf.mxu0
    %v271 = vadd.f32 0.0, %v270
    %272 = vmatmul.f32.gmra.mxu0 %v177
    %v273 = vpop.f32.mrf.mxu0
    %v274 = vadd.f32 0.0, %v273
    %275 = vdwg.mxu0
    %s276 = scalar_lea.vmem [#allocation5], 64
    %277 = vst.msk [vmem:[%s276] sm:$0xff] %vm208, %v265
    %278 = vst.msk [vmem:[%s276 + $0x8] sm:$0xff] %vm208, %v268
    %279 = vst.msk [vmem:[%s276 + $0x10] sm:$0xff] %vm208, %v271
    %280 = vst.msk [vmem:[%s276 + $0x18] sm:$0xff] %vm208, %v274
    %281 = vmatpush.msra.mxu0 0.0
    %282 = vmatpush.msra.mxu0 0.0
    %283 = vmatpush.msra.mxu0 0.0
    %284 = vmatpush.msra.mxu0 0.0
    %285 = vmatpush.msra.mxu0 0.0
    %286 = vmatpush.msra.mxu0 0.0
    %287 = vmatpush.msra.mxu0 0.0
    %288 = vmatpush.msra.mxu0 0.0
    %289 = vmatpush.msra.mxu0 0.0
    %290 = vmatpush.msra.mxu0 0.0
    %291 = vmatpush.msra.mxu0 0.0
    %292 = vmatpush.msra.mxu0 0.0
    %293 = vmatpush.msra.mxu0 0.0
    %294 = vmatpush.msra.mxu0 0.0
    %295 = vmatpush.msra.mxu0 %v141
    %296 = vmatpush.msra.mxu0 %v138
    %297 = vmatmul.f32.gmra.mxu0 %v168
    %v298 = vpop.f32.mrf.mxu0
    %v299 = vadd.f32 0.0, %v298
    %300 = vmatmul.f32.gmra.mxu0 %v171
    %v301 = vpop.f32.mrf.mxu0
    %v302 = vadd.f32 0.0, %v301
    %303 = vmatmul.f32.gmra.mxu0 %v174
    %v304 = vpop.f32.mrf.mxu0
    %v305 = vadd.f32 0.0, %v304
    %306 = vmatmul.f32.gmra.mxu0 %v177
    %v307 = vpop.f32.mrf.mxu0
    %v308 = vadd.f32 0.0, %v307
    %309 = vdwg.mxu0
    %s310 = scalar_lea.vmem [#allocation5], 96
    %311 = vst.msk [vmem:[%s310] sm:$0xff] %vm208, %v299
    %312 = vst.msk [vmem:[%s310 + $0x8] sm:$0xff] %vm208, %v302
    %313 = vst.msk [vmem:[%s310 + $0x10] sm:$0xff] %vm208, %v305
    %314 = vst.msk [vmem:[%s310 + $0x18] sm:$0xff] %vm208, %v308
    %315 = vmatpush.msra.mxu0 0.0
    %316 = vmatpush.msra.mxu0 0.0
    %317 = vmatpush.msra.mxu0 0.0
    %318 = vmatpush.msra.mxu0 0.0
    %319 = vmatpush.msra.mxu0 0.0
    %320 = vmatpush.msra.mxu0 0.0
    %321 = vmatpush.msra.mxu0 0.0
    %322 = vmatpush.msra.mxu0 0.0
    %323 = vmatpush.msra.mxu0 0.0
    %324 = vmatpush.msra.mxu0 0.0
    %325 = vmatpush.msra.mxu0 0.0
    %326 = vmatpush.msra.mxu0 0.0
    %327 = vmatpush.msra.mxu0 0.0
    %328 = vmatpush.msra.mxu0 0.0
    %329 = vmatpush.msra.mxu0 %v147
    %330 = vmatpush.msra.mxu0 %v144
    %331 = vmatmul.f32.gmra.mxu0 %v168
    %v332 = vpop.f32.mrf.mxu0
    %v333 = vadd.f32 0.0, %v332
    %334 = vmatmul.f32.gmra.mxu0 %v171
    %v335 = vpop.f32.mrf.mxu0
    %v336 = vadd.f32 0.0, %v335
    %337 = vmatmul.f32.gmra.mxu0 %v174
    %v338 = vpop.f32.mrf.mxu0
    %v339 = vadd.f32 0.0, %v338
    %340 = vmatmul.f32.gmra.mxu0 %v177
    %v341 = vpop.f32.mrf.mxu0
    %v342 = vadd.f32 0.0, %v341
    %343 = vdwg.mxu0
    %s344 = scalar_lea.vmem [#allocation5], 128
    %345 = vst.msk [vmem:[%s344] sm:$0xff] %vm208, %v333
    %346 = vst.msk [vmem:[%s344 + $0x8] sm:$0xff] %vm208, %v336
    %347 = vst.msk [vmem:[%s344 + $0x10] sm:$0xff] %vm208, %v339
    %348 = vst.msk [vmem:[%s344 + $0x18] sm:$0xff] %vm208, %v342
    %349 = vmatpush.msra.mxu0 0.0
    %350 = vmatpush.msra.mxu0 0.0
    %351 = vmatpush.msra.mxu0 0.0
    %352 = vmatpush.msra.mxu0 0.0
    %353 = vmatpush.msra.mxu0 0.0
    %354 = vmatpush.msra.mxu0 0.0
    %355 = vmatpush.msra.mxu0 0.0
    %356 = vmatpush.msra.mxu0 0.0
    %357 = vmatpush.msra.mxu0 0.0
    %358 = vmatpush.msra.mxu0 0.0
    %359 = vmatpush.msra.mxu0 0.0
    %360 = vmatpush.msra.mxu0 0.0
    %361 = vmatpush.msra.mxu0 0.0
    %362 = vmatpush.msra.mxu0 0.0
    %363 = vmatpush.msra.mxu0 %v153
    %364 = vmatpush.msra.mxu0 %v150
    %365 = vmatmul.f32.gmra.mxu0 %v168
    %v366 = vpop.f32.mrf.mxu0
    %v367 = vadd.f32 0.0, %v366
    %368 = vmatmul.f32.gmra.mxu0 %v171
    %v369 = vpop.f32.mrf.mxu0
    %v370 = vadd.f32 0.0, %v369
    %371 = vmatmul.f32.gmra.mxu0 %v174
    %v372 = vpop.f32.mrf.mxu0
    %v373 = vadd.f32 0.0, %v372
    %374 = vmatmul.f32.gmra.mxu0 %v177
    %v375 = vpop.f32.mrf.mxu0
    %v376 = vadd.f32 0.0, %v375
    %377 = vdwg.mxu0
    %s378 = scalar_lea.vmem [#allocation5], 160
    %379 = vst.msk [vmem:[%s378] sm:$0xff] %vm208, %v367
    %380 = vst.msk [vmem:[%s378 + $0x8] sm:$0xff] %vm208, %v370
    %381 = vst.msk [vmem:[%s378 + $0x10] sm:$0xff] %vm208, %v373
    %382 = vst.msk [vmem:[%s378 + $0x18] sm:$0xff] %vm208, %v376
    %383 = vmatpush.msra.mxu0 0.0
    %384 = vmatpush.msra.mxu0 0.0
    %385 = vmatpush.msra.mxu0 0.0
    %386 = vmatpush.msra.mxu0 0.0
    %387 = vmatpush.msra.mxu0 0.0
    %388 = vmatpush.msra.mxu0 0.0
    %389 = vmatpush.msra.mxu0 0.0
    %390 = vmatpush.msra.mxu0 0.0
    %391 = vmatpush.msra.mxu0 0.0
    %392 = vmatpush.msra.mxu0 0.0
    %393 = vmatpush.msra.mxu0 0.0
    %394 = vmatpush.msra.mxu0 0.0
    %395 = vmatpush.msra.mxu0 0.0
    %396 = vmatpush.msra.mxu0 0.0
    %397 = vmatpush.msra.mxu0 %v159
    %398 = vmatpush.msra.mxu0 %v156
    %399 = vmatmul.f32.gmra.mxu0 %v168
    %v400 = vpop.f32.mrf.mxu0
    %v401 = vadd.f32 0.0, %v400
    %402 = vmatmul.f32.gmra.mxu0 %v171
    %v403 = vpop.f32.mrf.mxu0
    %v404 = vadd.f32 0.0, %v403
    %405 = vmatmul.f32.gmra.mxu0 %v174
    %v406 = vpop.f32.mrf.mxu0
    %v407 = vadd.f32 0.0, %v406
    %408 = vmatmul.f32.gmra.mxu0 %v177
    %v409 = vpop.f32.mrf.mxu0
    %v410 = vadd.f32 0.0, %v409
    %411 = vdwg.mxu0
    %s412 = scalar_lea.vmem [#allocation5], 192
    %413 = vst.msk [vmem:[%s412] sm:$0xff] %vm208, %v401
    %414 = vst.msk [vmem:[%s412 + $0x8] sm:$0xff] %vm208, %v404
    %415 = vst.msk [vmem:[%s412 + $0x10] sm:$0xff] %vm208, %v407
    %416 = vst.msk [vmem:[%s412 + $0x18] sm:$0xff] %vm208, %v410
    %417 = vmatpush.msra.mxu0 0.0
    %418 = vmatpush.msra.mxu0 0.0
    %419 = vmatpush.msra.mxu0 0.0
    %420 = vmatpush.msra.mxu0 0.0
    %421 = vmatpush.msra.mxu0 0.0
    %422 = vmatpush.msra.mxu0 0.0
    %423 = vmatpush.msra.mxu0 0.0
    %424 = vmatpush.msra.mxu0 0.0
    %425 = vmatpush.msra.mxu0 0.0
    %426 = vmatpush.msra.mxu0 0.0
    %427 = vmatpush.msra.mxu0 0.0
    %428 = vmatpush.msra.mxu0 0.0
    %429 = vmatpush.msra.mxu0 0.0
    %430 = vmatpush.msra.mxu0 0.0
    %431 = vmatpush.msra.mxu0 %v165
    %432 = vmatpush.msra.mxu0 %v162
    %433 = vmatmul.f32.gmra.mxu0 %v168
    %v434 = vpop.f32.mrf.mxu0
    %v435 = vadd.f32 0.0, %v434
    %436 = vmatmul.f32.gmra.mxu0 %v171
    %v437 = vpop.f32.mrf.mxu0
    %v438 = vadd.f32 0.0, %v437
    %439 = vmatmul.f32.gmra.mxu0 %v174
    %v440 = vpop.f32.mrf.mxu0
    %v441 = vadd.f32 0.0, %v440
    %442 = vmatmul.f32.gmra.mxu0 %v177
    %v443 = vpop.f32.mrf.mxu0
    %v444 = vadd.f32 0.0, %v443
    %445 = vdwg.mxu0
    %s446 = scalar_lea.vmem [#allocation5], 224
    %447 = vst.msk [vmem:[%s446] sm:$0xff] %vm208, %v435
    %448 = vst.msk [vmem:[%s446 + $0x8] sm:$0xff] %vm208, %v438
    %449 = vst.msk [vmem:[%s446 + $0x10] sm:$0xff] %vm208, %v441
    %450 = vst.msk [vmem:[%s446 + $0x18] sm:$0xff] %vm208, %v444
    // Predicated region
    $region18: #{tpu_custom_call.1} parent=1 // pred_check
      _
    $region19: #{tpu_custom_call.1} parent=1 // pred_check_branch
      %452 = sbr.rel (0) target = $region21
    $region20: #{tpu_custom_call.1} parent=1 // pred_region
      %454 = vsyncadd [#allocation4], 0
      %s455 = sshll.u32 [#allocation5], 4
      %s456 = int_to_ptr.vmem [resolvable:$true] %s455
      %s457 = sshll.u32 %s3, 4
      %s458 = int_to_ptr.hbm [resolvable:$true] %s457
      %463 = dma.vmem_to_hbm [thread:$0]  %s456, 4096, %s458, [#allocation4], 128, 128, 8
    $region21: #{tpu_custom_call.1} parent=1 // pred_fallthru
      _
    // Predicated region
    $region22: #{tpu_custom_call.1} parent=1 // pred_check
      _
    $region23: #{tpu_custom_call.1} parent=1 // pred_check_branch
      %465 = sbr.rel (0) target = $region25
    $region24: #{tpu_custom_call.1} parent=1 // pred_region
      %467 = dma.done [#allocation4], 4096
    $region25: #{tpu_custom_call.1} parent=1 // pred_fallthru
      _
    %468 = vsyncpa [#allocation3], 1
    %469 = vsyncpa [#allocation4], 1

</llo_original>
